<compile_context>
chip_gen: v5e
topology: v5e:2x2
jax: 0.10.0
libtpu: 0.0.40
codegen_flags: <defaults>
</compile_context>

<pallas_src>
import functools

import numpy as np
import jax
import jax.numpy as jnp
from jax import lax
from jax.experimental import pallas as pl
from jax.experimental.pallas import tpu as pltpu


def _dft2_kron_fused(h, w):
    """[Re | Im] of the 2D-DFT operator acting on row-major flattened (h, w)
    images:  X_flat = x_flat @ kron(F_h, F_w), F = C - i*S (F symmetric), so
      Re = kron(Ch, Cw) - kron(Sh, Sw),  Im = -(kron(Ch, Sw) + kron(Sh, Cw)).
    Returned fused as one (h*w, 2*h*w) float32 matrix."""
    kh = np.arange(h)
    kw = np.arange(w)
    ah = 2.0 * np.pi * np.outer(kh, kh) / h
    aw = 2.0 * np.pi * np.outer(kw, kw) / w
    ch, sh = np.cos(ah), np.sin(ah)
    cw, sw = np.cos(aw), np.sin(aw)
    k_re = np.kron(ch, cw) - np.kron(sh, sw)
    k_im = -(np.kron(ch, sw) + np.kron(sh, cw))
    return np.concatenate([k_re, k_im], axis=1).astype(np.float32)


def _one_class_loss_kernel(x_ref, y_ref, reg_ref, k_hbm_ref, out_ref,
                           k_vmem, dma_sem):
    B2, N = x_ref.shape          # (2B, H*W)
    B = B2 // 2

    # Kick off the fused-DFT weight DMA (HBM -> VMEM) immediately so it
    # overlaps the logits/softmax/BCE work below (which only needs x and y).
    k_copy = pltpu.make_async_copy(k_hbm_ref, k_vmem, dma_sem)
    k_copy.start()

    # ---- logits = Frobenius norm of (R1 - R2) per sample (f32) ----
    r1 = x_ref[0:B, :]                                    # (B, N)
    r2 = x_ref[B:B2, :]                                   # (B, N)
    diff = r1 - r2
    sqsum = jnp.sum(diff * diff, axis=1, keepdims=True)   # (B, 1)
    logits = jnp.sqrt(sqsum)                              # (B, 1)

    # ---- softmax over batch of -logits ----
    neg = -logits
    m = jnp.max(neg, axis=0, keepdims=True)               # (1, 1)
    e = jnp.exp(neg - m)                                  # (B, 1)
    p = e / jnp.sum(e, axis=0, keepdims=True)             # (B, 1)

    # ---- BCE(p, Y) mean reduction (torch clamps log at -100) ----
    y = y_ref[...]                                        # (B, 1)
    logp = jnp.maximum(jnp.log(p), -100.0)
    log1mp = jnp.maximum(jnp.log(1.0 - p), -100.0)
    bce = -jnp.sum(y * logp + (1.0 - y) * log1mp,
                   axis=0, keepdims=True) / B             # (1, 1)

    # ---- mean(avgpsd) exactly in f32 via Parseval:
    #      sum_k |FFT2(x)|^2 = N * sum_n x_n^2
    x = x_ref[...]                                        # (2B, N) f32
    row_sq = jnp.sum(x * x, axis=1, keepdims=True)        # (2B, 1)
    mean_psd = jnp.sum(row_sq, axis=0, keepdims=True) / B2  # (1, 1)

    # ---- PSD: |FFT2|^2 via ONE fused Kronecker-DFT matmul [Re | Im] ----
    # TODO(synk): no FFT primitive in Pallas; 2D DFT realized as dense matmul.
    k_copy.wait()                                          # K now in VMEM
    xk = jnp.dot(x, k_vmem[...],
                 preferred_element_type=jnp.float32,
                 precision=lax.Precision.HIGHEST)          # (2B, 2N) f32
    x_re = xk[:, 0:N]
    x_im = xk[:, N:2 * N]
    power = x_re * x_re + x_im * x_im                      # (2B, N)
    avgpsd = jnp.sum(power, axis=0, keepdims=True) / B2    # (1, N)
    mean_log = jnp.sum(jnp.log(avgpsd), axis=1, keepdims=True) / N  # (1, 1)
    r_val = mean_log - jnp.log(mean_psd)                   # (1, 1)

    reg = reg_ref[0, 0]
    out_ref[...] = bce - reg * r_val


@functools.lru_cache(maxsize=None)
def _build_loss_fn(B, H, W):
    """Build (once per shape) the jitted loss fn with baked DFT constants."""
    N = H * W
    k_fused = _dft2_kron_fused(H, W)           # np.float32 (N, 2N), host, once

    flops = 2 * (2 * B) * N * (2 * N) + 12 * (2 * B) * N   # fused dot + elemwise
    bytes_accessed = (2 * B) * N * 4 + B * 4 + N * (2 * N) * 4 + 8

    call = pl.pallas_call(
        _one_class_loss_kernel,
        out_shape=jax.ShapeDtypeStruct((1, 1), jnp.float32),
        in_specs=[
            pl.BlockSpec(memory_space=pltpu.MemorySpace.VMEM),   # x slab
            pl.BlockSpec(memory_space=pltpu.MemorySpace.VMEM),   # y
            pl.BlockSpec(memory_space=pltpu.MemorySpace.SMEM),   # reg scalar
            pl.BlockSpec(memory_space=pl.ANY),                   # fused K (HBM)
        ],
        out_specs=pl.BlockSpec(memory_space=pltpu.MemorySpace.VMEM),
        scratch_shapes=[
            pltpu.VMEM((N, 2 * N), jnp.float32),   # K landing buffer
            pltpu.SemaphoreType.DMA,               # K DMA semaphore
        ],
        cost_estimate=pl.CostEstimate(
            flops=flops,
            transcendentals=N + 6 * B + 4,
            bytes_accessed=bytes_accessed),
    )

    @jax.jit
    def fn(R1, R2, Y, reg):
        r1 = jnp.reshape(jnp.asarray(R1, jnp.float32), (B, N))
        r2 = jnp.reshape(jnp.asarray(R2, jnp.float32), (B, N))
        # Lane-dense (2B, N) slab; at small B this fused concat is noise.
        x = jnp.concatenate([r1, r2], axis=0)
        y = jnp.reshape(jnp.asarray(Y, jnp.float32), (B, 1))
        reg_arr = jnp.reshape(jnp.asarray(reg, jnp.float32), (1, 1))
        k = jnp.asarray(k_fused)                 # baked compile-time constant
        return call(x, y, reg_arr, k)[0, 0]

    return fn


def one_class_loss(R1, R2, Y, reg):
    B = R1.shape[0]
    H, W = R1.shape[-2], R1.shape[-1]
    # TODO(synk): for large B, add a batch grid over rows with
    # dimension_semantics=("parallel",) (v7x dual-TC) and tile against 64 MiB
    # VMEM; at B=2 the single call is launch/DMA latency bound.
    return _build_loss_fn(B, H, W)(R1, R2, Y, reg)


def one_class_loss_ref(R1, R2, Y, reg):
    """Pure-JAX reference mirroring the PyTorch forward."""
    B = R1.shape[0]
    H, W = R1.shape[-2], R1.shape[-1]
    r1 = jnp.reshape(R1, (B, H, W))
    r2 = jnp.reshape(R2, (B, H, W))
    y = jnp.reshape(Y, (B,))
    logits = jnp.sqrt(jnp.sum((r1 - r2) ** 2, axis=(1, 2)))
    p = jax.nn.softmax(-logits)
    bce = -jnp.mean(y * jnp.maximum(jnp.log(p), -100.0)
                    + (1.0 - y) * jnp.maximum(jnp.log(1.0 - p), -100.0))
    x = jnp.concatenate([r1, r2], axis=0)
    dft = jnp.fft.fft2(x)
    avgpsd = jnp.mean((dft * jnp.conj(dft)).real, axis=0)
    r = jnp.mean(jnp.log(avgpsd)) - jnp.log(jnp.mean(avgpsd))
    return bce - reg * r


if __name__ == "__main__":
    key = jax.random.PRNGKey(0)
    k1, k2, k3 = jax.random.split(key, 3)
    B, C, H, W = 2, 1, 16, 16
    R1 = jax.random.normal(k1, (B, C, H, W), dtype=jnp.float32)
    R2 = jax.random.normal(k2, (B, C, H, W), dtype=jnp.float32)
    Y = jax.random.bernoulli(k3, 0.5, (B,)).astype(jnp.float32)
    reg = 0.1

    loss = one_class_loss(R1, R2, Y, reg)
    jax.block_until_ready(loss)
    # Second call exercises the cached/jitted path (no retrace, no re-upload).
    loss2 = jax.block_until_ready(one_class_loss(R1, R2, Y, reg))

    ref = one_class_loss_ref(R1, R2, Y, reg)
    assert jnp.allclose(loss, ref, rtol=5e-3, atol=5e-3), (loss, ref)
    assert jnp.allclose(loss2, ref, rtol=5e-3, atol=5e-3), (loss2, ref)
    print("KERNEL_OK")
</pallas_src>

<mosaic_0001>
module attributes {stable_mosaic.version = 11 : i64} {
  func.func @_one_class_loss_kernel(%arg0: memref<4x256xf32, #tpu.memory_space<vmem>>, %arg1: memref<2x1xf32, #tpu.memory_space<vmem>>, %arg2: memref<1x1xf32, #tpu.memory_space<smem>>, %arg3: memref<256x512xf32, #tpu.memory_space<any>>, %arg4: memref<1x1xf32, #tpu.memory_space<vmem>>, %arg5: memref<256x512xf32, #tpu.memory_space<vmem>>, %arg6: memref<!tpu.dma_semaphore, #tpu.memory_space<semaphore_mem>>) attributes {dimension_semantics = [], scalar_prefetch = 0 : i64, scratch_operands = 2 : i64, tpu.core_type = #tpu.core_type<tc>} {
    tpu.enqueue_dma source(%arg3 : memref<256x512xf32, #tpu.memory_space<any>>) target(%arg5 : memref<256x512xf32, #tpu.memory_space<vmem>>) target_semaphore(%arg6 : memref<!tpu.dma_semaphore, #tpu.memory_space<semaphore_mem>>)
    %c0 = arith.constant 0 : index
    %c0_0 = arith.constant 0 : index
    %0 = vector.load %arg0[%c0, %c0_0] : memref<4x256xf32, #tpu.memory_space<vmem>>, vector<2x256xf32>
    %c2 = arith.constant 2 : index
    %c0_1 = arith.constant 0 : index
    %1 = vector.load %arg0[%c2, %c0_1] : memref<4x256xf32, #tpu.memory_space<vmem>>, vector<2x256xf32>
    %2 = arith.subf %0, %1 : vector<2x256xf32>
    %3 = arith.mulf %2, %2 : vector<2x256xf32>
    %cst = arith.constant dense<0.000000e+00> : vector<2xf32>
    %4 = vector.multi_reduction <add>, %3, %cst [1] : vector<2x256xf32> to vector<2xf32>
    %5 = vector.shape_cast %4 : vector<2xf32> to vector<2x1xf32>
    %6 = math.sqrt %5 : vector<2x1xf32>
    %cst_2 = arith.constant 0.000000e+00 : f32
    %7 = vector.broadcast %cst_2 : f32 to vector<2x1xf32>
    %8 = arith.subf %7, %6 : vector<2x1xf32>
    %cst_3 = arith.constant dense<0xFF800000> : vector<1xf32>
    %9 = vector.multi_reduction <maximumf>, %8, %cst_3 [0] : vector<2x1xf32> to vector<1xf32>
    %10 = vector.shape_cast %9 : vector<1xf32> to vector<1x1xf32>
    %11 = vector.broadcast %10 : vector<1x1xf32> to vector<2x1xf32>
    %12 = arith.subf %8, %11 : vector<2x1xf32>
    %13 = math.exp %12 : vector<2x1xf32>
    %cst_4 = arith.constant dense<0.000000e+00> : vector<1xf32>
    %14 = vector.multi_reduction <add>, %13, %cst_4 [0] : vector<2x1xf32> to vector<1xf32>
    %15 = vector.shape_cast %14 : vector<1xf32> to vector<1x1xf32>
    %16 = vector.broadcast %15 : vector<1x1xf32> to vector<2x1xf32>
    %17 = arith.divf %13, %16 : vector<2x1xf32>
    %c0_5 = arith.constant 0 : index
    %c0_6 = arith.constant 0 : index
    %18 = vector.load %arg1[%c0_5, %c0_6] : memref<2x1xf32, #tpu.memory_space<vmem>>, vector<2x1xf32>
    %19 = math.log %17 : vector<2x1xf32>
    %cst_7 = arith.constant -1.000000e+02 : f32
    %20 = vector.broadcast %cst_7 : f32 to vector<2x1xf32>
    %21 = arith.maximumf %19, %20 : vector<2x1xf32>
    %cst_8 = arith.constant 1.000000e+00 : f32
    %22 = vector.broadcast %cst_8 : f32 to vector<2x1xf32>
    %23 = arith.subf %22, %17 : vector<2x1xf32>
    %24 = math.log %23 : vector<2x1xf32>
    %cst_9 = arith.constant -1.000000e+02 : f32
    %25 = vector.broadcast %cst_9 : f32 to vector<2x1xf32>
    %26 = arith.maximumf %24, %25 : vector<2x1xf32>
    %27 = arith.mulf %18, %21 : vector<2x1xf32>
    %cst_10 = arith.constant 1.000000e+00 : f32
    %28 = vector.broadcast %cst_10 : f32 to vector<2x1xf32>
    %29 = arith.subf %28, %18 : vector<2x1xf32>
    %30 = arith.mulf %29, %26 : vector<2x1xf32>
    %31 = arith.addf %27, %30 : vector<2x1xf32>
    %cst_11 = arith.constant dense<0.000000e+00> : vector<1xf32>
    %32 = vector.multi_reduction <add>, %31, %cst_11 [0] : vector<2x1xf32> to vector<1xf32>
    %33 = vector.shape_cast %32 : vector<1xf32> to vector<1x1xf32>
    %cst_12 = arith.constant 0.000000e+00 : f32
    %34 = vector.broadcast %cst_12 : f32 to vector<1x1xf32>
    %35 = arith.subf %34, %33 : vector<1x1xf32>
    %cst_13 = arith.constant 2.000000e+00 : f32
    %36 = vector.broadcast %cst_13 : f32 to vector<1x1xf32>
    %37 = arith.divf %35, %36 : vector<1x1xf32>
    %c0_14 = arith.constant 0 : index
    %c0_15 = arith.constant 0 : index
    %38 = vector.load %arg0[%c0_14, %c0_15] : memref<4x256xf32, #tpu.memory_space<vmem>>, vector<4x256xf32>
    %39 = arith.mulf %38, %38 : vector<4x256xf32>
    %cst_16 = arith.constant dense<0.000000e+00> : vector<4xf32>
    %40 = vector.multi_reduction <add>, %39, %cst_16 [1] : vector<4x256xf32> to vector<4xf32>
    %41 = vector.shape_cast %40 : vector<4xf32> to vector<4x1xf32>
    %cst_17 = arith.constant dense<0.000000e+00> : vector<1xf32>
    %42 = vector.multi_reduction <add>, %41, %cst_17 [0] : vector<4x1xf32> to vector<1xf32>
    %43 = vector.shape_cast %42 : vector<1xf32> to vector<1x1xf32>
    %cst_18 = arith.constant 4.000000e+00 : f32
    %44 = vector.broadcast %cst_18 : f32 to vector<1x1xf32>
    %45 = arith.divf %43, %44 : vector<1x1xf32>
    tpu.wait_dma2 semaphore(%arg6 : memref<!tpu.dma_semaphore, #tpu.memory_space<semaphore_mem>>) src(%arg3 : memref<256x512xf32, #tpu.memory_space<any>>) dst(%arg5 : memref<256x512xf32, #tpu.memory_space<vmem>>)
    %c0_19 = arith.constant 0 : index
    %c0_20 = arith.constant 0 : index
    %46 = vector.load %arg5[%c0_19, %c0_20] : memref<256x512xf32, #tpu.memory_space<vmem>>, vector<256x512xf32>
    %cst_21 = arith.constant dense<0.000000e+00> : vector<4x512xf32>
    %47 = tpu.matmul %38, %46, %cst_21 {dimension_numbers = #tpu.dot_dimension_numbers<[1], [0], [0], [1], [0, 0, 1, 1], [], []>, precision = #tpu.contract_precision<fp32>} : vector<4x256xf32>, vector<256x512xf32>, vector<4x512xf32> -> vector<4x512xf32>
    %48 = vector.extract_strided_slice %47 {offsets = [0, 0], sizes = [4, 256], strides = [1, 1]} : vector<4x512xf32> to vector<4x256xf32>
    %49 = vector.extract_strided_slice %47 {offsets = [0, 256], sizes = [4, 256], strides = [1, 1]} : vector<4x512xf32> to vector<4x256xf32>
    %50 = arith.mulf %48, %48 : vector<4x256xf32>
    %51 = arith.mulf %49, %49 : vector<4x256xf32>
    %52 = arith.addf %50, %51 : vector<4x256xf32>
    %cst_22 = arith.constant dense<0.000000e+00> : vector<256xf32>
    %53 = vector.multi_reduction <add>, %52, %cst_22 [0] : vector<4x256xf32> to vector<256xf32>
    %54 = vector.shape_cast %53 : vector<256xf32> to vector<1x256xf32>
    %cst_23 = arith.constant 4.000000e+00 : f32
    %55 = vector.broadcast %cst_23 : f32 to vector<1x256xf32>
    %56 = arith.divf %54, %55 : vector<1x256xf32>
    %57 = math.log %56 : vector<1x256xf32>
    %cst_24 = arith.constant dense<0.000000e+00> : vector<1xf32>
    %58 = vector.multi_reduction <add>, %57, %cst_24 [1] : vector<1x256xf32> to vector<1xf32>
    %59 = vector.shape_cast %58 : vector<1xf32> to vector<1x1xf32>
    %cst_25 = arith.constant 2.560000e+02 : f32
    %60 = vector.broadcast %cst_25 : f32 to vector<1x1xf32>
    %61 = arith.divf %59, %60 : vector<1x1xf32>
    %62 = math.log %45 : vector<1x1xf32>
    %63 = arith.subf %61, %62 : vector<1x1xf32>
    %c0_26 = arith.constant 0 : index
    %c0_27 = arith.constant 0 : index
    %64 = memref.load %arg2[%c0_26, %c0_27] : memref<1x1xf32, #tpu.memory_space<smem>>
    %65 = vector.broadcast %64 : f32 to vector<1x1xf32>
    %66 = arith.mulf %65, %63 : vector<1x1xf32>
    %67 = arith.subf %37, %66 : vector<1x1xf32>
    %c0_28 = arith.constant 0 : index
    %c0_29 = arith.constant 0 : index
    %68 = vector.load %arg4[%c0_28, %c0_29] : memref<1x1xf32, #tpu.memory_space<vmem>>, vector<1x1xf32>
    tpu.vector_store %arg4[%c0_28, %c0_29], %67 {strides = array<i32>} : memref<1x1xf32, #tpu.memory_space<vmem>>, vector<1x1xf32>,
    return
  }
}

</mosaic_0001>

<llo_original>
// kernel: fn.1
$region0: #{fn.1}
  #allocation0 [shape = 'u32[]', space=smem, size = 0x4, offset = 0x4, fixed_abs, tag = 'smem constant byte address 0x4 - core index']
  #allocation1 [shape = 'u32[72,128]{1,0:T(1,128)}', space=vmem, size = 0x9000, scoped, tag = 'internal scratch']
  #allocation2 [shape = 'f32[256,512]{1,0:T(8,128)}', space=vmem, size = 0x80000, scoped, tag = 'scratch operand']
  #allocation3 [shape = 's32[1]{0}', space=sflag, size = 0x4, scoped, tag = 'scratch operand']
  #allocation4 [shape = 'f32[1,1]{1,0:T(1,128)S(6)}', space=smem, size = 0x200, scoped, tag = 'scoped memory for fn.1']
  #allocation7 [shape = 's32[]', space=sflag, size = 0x4, offset = 0, fixed_abs, tag = 'sflag constant byte address 0x0 - dummy sync flag']
  #allocation8 [shape = 's32[]', space=sflag, size = 0x4, offset = 0, fixed_abs, tag = 'sflag constant byte address 0x0 - dummy sync flag']
  #allocation9 [shape = 'u32[]', space=smem, size = 0x4, offset = 0x44, fixed_abs, tag = 'smem constant byte address 0x44 - assertion arg 0']
  #allocation10 [shape = 'u32[]', space=smem, size = 0x4, offset = 0x48, fixed_abs, tag = 'smem constant byte address 0x48 - assertion arg 1']
  %s0 = inlined_call_operand.vmem [shape: f32[4,256], index: 0, kind: input, shape index: {}]
  %s1 = inlined_call_operand.vmem [shape: f32[2,1], index: 1, kind: input, shape index: {}]
  %s2 = inlined_call_operand.<no memory space> [shape: f32[1,1], index: 2, kind: input, shape index: {}]
  %s3 = inlined_call_operand.hbm [shape: f32[256,512], index: 3, kind: input, shape index: {}]
  %s4 = inlined_call_operand.hbm [shape: f32[1,1], index: 4, kind: output, shape index: {}]
  %s5 = sld [smem:[#allocation0]]
  $region26: #{fn.1} parent=0
    _
  %s7 = ssub.s32 1, %s5
  %s8 = scalar_select 0, %s7, %s5
  %9 = sst [smem:[#allocation4]] %s2
  $region1: #{fn.1} parent=0
    #allocation5 [shape = 'u8[512]{0}', space=vmem, size = 0x400, scoped, tag = 'output window, operand 0, single buffered']
    #allocation6 [shape = 's32[1]{0}', space=sflag, size = 0x4, scoped, tag = 'scoped memory for fn.1']
    %10 = vsyncpa [#allocation6], 0
    // Predicated region
    $region2: #{fn.1} parent=1 // pred_check
      _
    $region3: #{fn.1} parent=1 // pred_check_branch
      %12 = sbr.rel (0) target = $region5
    $region4: #{fn.1} parent=1 // pred_region
      _
    $region5: #{fn.1} parent=1 // pred_fallthru
      _
    // Predicated region
    $region6: #{fn.1} parent=1 // pred_check
      _
    $region7: #{fn.1} parent=1 // pred_check_branch
      %14 = sbr.rel (0) target = $region9
    $region8: #{fn.1} parent=1 // pred_region
      _
    $region9: #{fn.1} parent=1 // pred_fallthru
      _
    // Predicated region
    $region10: #{fn.1} parent=1 // pred_check
      _
    $region11: #{fn.1} parent=1 // pred_check_branch
      %16 = sbr.rel (0) target = $region13
    $region12: #{fn.1} parent=1 // pred_region
      _
    $region13: #{fn.1} parent=1 // pred_fallthru
      _
    // Predicated region
    $region14: #{fn.1} parent=1 // pred_check
      _
    $region15: #{fn.1} parent=1 // pred_check_branch
      %18 = sbr.rel target = $region17
    $region16: #{fn.1} parent=1 // pred_region
      %19 = sst [smem:[#allocation9]] [#allocation8]
      %20 = sst [smem:[#allocation10]] [#allocation7]
    $region17: #{fn.1} parent=1 // pred_fallthru
      _
    %22 = shalt.err (0)
    %s24 = sshll.u32 %s3, 4
    %s25 = int_to_ptr.hbm [resolvable:$true] %s24
    %s26 = sshll.u32 [#allocation2], 4
    %s27 = int_to_ptr.vmem [resolvable:$true] %s26
    %29 = dma.hbm_to_vmem [thread:$0]  %s25, 16384, %s27, [#allocation3]
    %v30 = vld [vmem:[%s0] sm:$0x33]
    %v31 = vld [vmem:[%s0] sm:$0xcc]
    %v33 = vrot.slane %v31, 6
    %v34 = vrot.slane %v33, 4
    %v36 = vsub.f32 %v30, %v34
    %v37 = vmul.f32 %v36, %v36
    %39 = vst [vmem:[#allocation1] ss:$2 sm:$0xff] %v37
    %v40 = vld.sshfl [vmem:[#allocation1] sm:$0xff pattern:$0x75316420]
    %v41 = vld.sshfl [vmem:[#allocation1 + $0x8] sm:$0xff pattern:$0x75316420]
    %vm44 = vcmask 1041408
    %v45 = vsel %vm44, %v40, 0.0
    %v46 = vsel %vm44, %v41, 0.0
    %v47 = vadd.f32 %v45, %v46
    %48 = vadd.xlane.f32.xlu0 %v47
    %v49 = vpop.xlane.xlu0 %48
    %v50 = vrsqrt.pop %v49
    %v51 = vmul.f32 %v50, %v49
    %v52 = vmul.f32 %v51, %v50
    %v53 = vmul.f32 0.5, %v52
    %v54 = vsub.f32 1.5, %v53
    %v55 = vmul.f32 %v50, %v54
    %v56 = vmul.f32 %v49, %v55
    %vm57 = vcmp.eq.f32.partialorder %v49, inf
    %v58 = vsel %vm57, %v49, %v56
    %vm59 = vcmp.eq.f32.partialorder %v49, 0.0
    %v60 = vand.u32 %v49, 2147483648
    %v61 = vsel %vm59, %v60, %v58
    %v62 = vsub.f32 0.0, %v61
    %v63 = vsel %vm44, %v62, -inf
    %v64 = vrot.slane %v63, 4
    %v65 = vmax.f32 %v63, %v64
    %v66 = vrot.slane %v65, 2
    %v67 = vmax.f32 %v65, %v66
    %v68 = vrot.slane %v67, 1
    %v69 = vmax.f32 %v67, %v68
    %v70 = vsub.f32 %v62, %v69
    %v71 = vmul.f32 %v70, 1.442695
    %v72 = vpow.pop %v71
    %v73 = vsel %vm44, %v72, 0.0
    %v74 = vrot.slane %v73, 4
    %v75 = vadd.f32 %v73, %v74
    %v76 = vrot.slane %v75, 2
    %v77 = vadd.f32 %v75, %v76
    %v78 = vrot.slane %v77, 1
    %v79 = vadd.f32 %v77, %v78
    %v80 = vrcp.pop %v79
    %v81 = vmul.f32 %v79, %v80
    %v82 = vsub.f32 1.0, %v81
    %v83 = vmul.f32 %v80, %v82
    %v84 = vadd.f32 %v80, %v83
    %vm85 = vweird.f32 %v79
    %vm86 = vweird.f32 %v80
    %vm87 = vmor %vm85, %vm86
    %v88 = vsel %vm87, %v80, %v84
    %v89 = vand.u32 2147483647, %v79
    %vm90 = vcmp.eq.f32.partialorder %v89, 8.507059e+37
    %v91 = vand.u32 %v79, 2147483648
    %v92 = vor.u32 1.1754944e-38, %v91
    %v93 = vsel %vm90, %v92, %v88
    %v94 = vmul.f32 %v72, %v93
    %v95 = vld [vmem:[%s1] sm:$0x3]
    %v96 = vlog2.pop %v94
    %v97 = vmul.f32 %v96, 0.6931472
    %v98 = vmax.f32 %v97, -100.0
    %v99 = vsub.f32 1.0, %v94
    %v100 = vlog2.pop %v99
    %v101 = vmul.f32 %v100, 0.6931472
    %v102 = vmax.f32 %v101, -100.0
    %v103 = vmul.f32 %v95, %v98
    %v104 = vsub.f32 1.0, %v95
    %v105 = vmul.f32 %v104, %v102
    %v106 = vadd.f32 %v103, %v105
    %vm107 = vcmask 1024
    %v108 = vsel %vm107, %v106, 0.0
    %v109 = vrot.slane %v108, 4
    %v110 = vadd.f32 %v108, %v109
    %v111 = vrot.slane %v110, 2
    %v112 = vadd.f32 %v110, %v111
    %v113 = vrot.slane %v112, 1
    %v114 = vadd.f32 %v112, %v113
    %v115 = vsub.f32 0.0, %v114
    %v116 = vrcp.pop 2.0
    %v117 = vmul.f32 2.0, %v116
    %v118 = vsub.f32 1.0, %v117
    %v119 = vmul.f32 %v116, %v118
    %v120 = vadd.f32 %v116, %v119
    %vm121 = vweird.f32 %v116
    %v122 = vsel %vm121, %v116, %v120
    %v123 = vmul.f32 %v115, %v122
    %v124 = vld [vmem:[%s0] sm:$0xff]
    %v125 = vmul.f32 %v124, %v124
    %127 = vst [vmem:[#allocation1] ss:$2 sm:$0xff] %v125
    %v128 = vld.sshfl [vmem:[#allocation1] sm:$0xff pattern:$0x75316420]
    %v129 = vld.sshfl [vmem:[#allocation1 + $0x8] sm:$0xff pattern:$0x75316420]
    %vm132 = vcmask 1043456
    %v133 = vsel %vm132, %v128, 0.0
    %v134 = vsel %vm132, %v129, 0.0
    %v135 = vadd.f32 %v133, %v134
    %136 = vadd.xlane.f32.xlu0 %v135
    %v137 = vpop.xlane.xlu0 %136
    %v138 = vsel %vm132, %v137, 0.0
    %v139 = vrot.slane %v138, 4
    %v140 = vadd.f32 %v138, %v139
    %v141 = vrot.slane %v140, 2
    %v142 = vadd.f32 %v140, %v141
    %v143 = vrot.slane %v142, 1
    %v144 = vadd.f32 %v142, %v143
    %v145 = vrcp.pop 4.0
    %v146 = vmul.f32 4.0, %v145
    %v147 = vsub.f32 1.0, %v146
    %v148 = vmul.f32 %v145, %v147
    %v149 = vadd.f32 %v145, %v148
    %vm150 = vweird.f32 %v145
    %v151 = vsel %vm150, %v145, %v149
    %v152 = vmul.f32 %v144, %v151
    %s153 = smul.u32 8, 32
    %s154 = smul.u32 %s153, 4
    %s155 = sshll.u32 %s154, 4
    %156 = dma.done [#allocation3], %s155
    %v157 = vld [vmem:[#allocation2] sm:$0xff]
    %v158 = vld [vmem:[#allocation2 + $0x8] sm:$0xff]
    %v159 = vld [vmem:[#allocation2 + $0x10] sm:$0xff]
    %v160 = vld [vmem:[#allocation2 + $0x18] sm:$0xff]
    %v161 = vld [vmem:[#allocation2 + $0x20] sm:$0xff]
    %v162 = vld [vmem:[#allocation2 + $0x28] sm:$0xff]
    %v163 = vld [vmem:[#allocation2 + $0x30] sm:$0xff]
    %v164 = vld [vmem:[#allocation2 + $0x38] sm:$0xff]
    %v165 = vld [vmem:[#allocation2 + $0x40] sm:$0xff]
    %v166 = vld [vmem:[#allocation2 + $0x48] sm:$0xff]
    %v167 = vld [vmem:[#allocation2 + $0x50] sm:$0xff]
    %v168 = vld [vmem:[#allocation2 + $0x58] sm:$0xff]
    %v169 = vld [vmem:[#allocation2 + $0x60] sm:$0xff]
    %v170 = vld [vmem:[#allocation2 + $0x68] sm:$0xff]
    %v171 = vld [vmem:[#allocation2 + $0x70] sm:$0xff]
    %v172 = vld [vmem:[#allocation2 + $0x78] sm:$0xff]
    %v173 = vld [vmem:[#allocation2 + $0x80] sm:$0xff]
    %v174 = vld [vmem:[#allocation2 + $0x88] sm:$0xff]
    %v175 = vld [vmem:[#allocation2 + $0x90] sm:$0xff]
    %v176 = vld [vmem:[#allocation2 + $0x98] sm:$0xff]
    %v177 = vld [vmem:[#allocation2 + $0xa0] sm:$0xff]
    %v178 = vld [vmem:[#allocation2 + $0xa8] sm:$0xff]
    %v179 = vld [vmem:[#allocation2 + $0xb0] sm:$0xff]
    %v180 = vld [vmem:[#allocation2 + $0xb8] sm:$0xff]
    %v181 = vld [vmem:[#allocation2 + $0xc0] sm:$0xff]
    %v182 = vld [vmem:[#allocation2 + $0xc8] sm:$0xff]
    %v183 = vld [vmem:[#allocation2 + $0xd0] sm:$0xff]
    %v184 = vld [vmem:[#allocation2 + $0xd8] sm:$0xff]
    %v185 = vld [vmem:[#allocation2 + $0xe0] sm:$0xff]
    %v186 = vld [vmem:[#allocation2 + $0xe8] sm:$0xff]
    %v187 = vld [vmem:[#allocation2 + $0xf0] sm:$0xff]
    %v188 = vld [vmem:[#allocation2 + $0xf8] sm:$0xff]
    %v189 = vld [vmem:[#allocation2 + $0x100] sm:$0xff]
    %v190 = vld [vmem:[#allocation2 + $0x108] sm:$0xff]
    %v191 = vld [vmem:[#allocation2 + $0x110] sm:$0xff]
    %v192 = vld [vmem:[#allocation2 + $0x118] sm:$0xff]
    %v193 = vld [vmem:[#allocation2 + $0x120] sm:$0xff]
    %v194 = vld [vmem:[#allocation2 + $0x128] sm:$0xff]
    %v195 = vld [vmem:[#allocation2 + $0x130] sm:$0xff]
    %v196 = vld [vmem:[#allocation2 + $0x138] sm:$0xff]
    %v197 = vld [vmem:[#allocation2 + $0x140] sm:$0xff]
    %v198 = vld [vmem:[#allocation2 + $0x148] sm:$0xff]
    %v199 = vld [vmem:[#allocation2 + $0x150] sm:$0xff]
    %v200 = vld [vmem:[#allocation2 + $0x158] sm:$0xff]
    %v201 = vld [vmem:[#allocation2 + $0x160] sm:$0xff]
    %v202 = vld [vmem:[#allocation2 + $0x168] sm:$0xff]
    %v203 = vld [vmem:[#allocation2 + $0x170] sm:$0xff]
    %v204 = vld [vmem:[#allocation2 + $0x178] sm:$0xff]
    %v205 = vld [vmem:[#allocation2 + $0x180] sm:$0xff]
    %v206 = vld [vmem:[#allocation2 + $0x188] sm:$0xff]
    %v207 = vld [vmem:[#allocation2 + $0x190] sm:$0xff]
    %v208 = vld [vmem:[#allocation2 + $0x198] sm:$0xff]
    %v209 = vld [vmem:[#allocation2 + $0x1a0] sm:$0xff]
    %v210 = vld [vmem:[#allocation2 + $0x1a8] sm:$0xff]
    %v211 = vld [vmem:[#allocation2 + $0x1b0] sm:$0xff]
    %v212 = vld [vmem:[#allocation2 + $0x1b8] sm:$0xff]
    %v213 = vld [vmem:[#allocation2 + $0x1c0] sm:$0xff]
    %v214 = vld [vmem:[#allocation2 + $0x1c8] sm:$0xff]
    %v215 = vld [vmem:[#allocation2 + $0x1d0] sm:$0xff]
    %v216 = vld [vmem:[#allocation2 + $0x1d8] sm:$0xff]
    %v217 = vld [vmem:[#allocation2 + $0x1e0] sm:$0xff]
    %v218 = vld [vmem:[#allocation2 + $0x1e8] sm:$0xff]
    %v219 = vld [vmem:[#allocation2 + $0x1f0] sm:$0xff]
    %v220 = vld [vmem:[#allocation2 + $0x1f8] sm:$0xff]
    %v221 = vld [vmem:[#allocation2 + $0x200] sm:$0xff]
    %v222 = vld [vmem:[#allocation2 + $0x208] sm:$0xff]
    %v223 = vld [vmem:[#allocation2 + $0x210] sm:$0xff]
    %v224 = vld [vmem:[#allocation2 + $0x218] sm:$0xff]
    %v225 = vld [vmem:[#allocation2 + $0x220] sm:$0xff]
    %v226 = vld [vmem:[#allocation2 + $0x228] sm:$0xff]
    %v227 = vld [vmem:[#allocation2 + $0x230] sm:$0xff]
    %v228 = vld [vmem:[#allocation2 + $0x238] sm:$0xff]
    %v229 = vld [vmem:[#allocation2 + $0x240] sm:$0xff]
    %v230 = vld [vmem:[#allocation2 + $0x248] sm:$0xff]
    %v231 = vld [vmem:[#allocation2 + $0x250] sm:$0xff]
    %v232 = vld [vmem:[#allocation2 + $0x258] sm:$0xff]
    %v233 = vld [vmem:[#allocation2 + $0x260] sm:$0xff]
    %v234 = vld [vmem:[#allocation2 + $0x268] sm:$0xff]
    %v235 = vld [vmem:[#allocation2 + $0x270] sm:$0xff]
    %v236 = vld [vmem:[#allocation2 + $0x278] sm:$0xff]
    %v237 = vld [vmem:[#allocation2 + $0x280] sm:$0xff]
    %v238 = vld [vmem:[#allocation2 + $0x288] sm:$0xff]
    %v239 = vld [vmem:[#allocation2 + $0x290] sm:$0xff]
    %v240 = vld [vmem:[#allocation2 + $0x298] sm:$0xff]
    %v241 = vld [vmem:[#allocation2 + $0x2a0] sm:$0xff]
    %v242 = vld [vmem:[#allocation2 + $0x2a8] sm:$0xff]
    %v243 = vld [vmem:[#allocation2 + $0x2b0] sm:$0xff]
    %v244 = vld [vmem:[#allocation2 + $0x2b8] sm:$0xff]
    %v245 = vld [vmem:[#allocation2 + $0x2c0] sm:$0xff]
    %v246 = vld [vmem:[#allocation2 + $0x2c8] sm:$0xff]
    %v247 = vld [vmem:[#allocation2 + $0x2d0] sm:$0xff]
    %v248 = vld [vmem:[#allocation2 + $0x2d8] sm:$0xff]
    %v249 = vld [vmem:[#allocation2 + $0x2e0] sm:$0xff]
    %v250 = vld [vmem:[#allocation2 + $0x2e8] sm:$0xff]
    %v251 = vld [vmem:[#allocation2 + $0x2f0] sm:$0xff]
    %v252 = vld [vmem:[#allocation2 + $0x2f8] sm:$0xff]
    %v253 = vld [vmem:[#allocation2 + $0x300] sm:$0xff]
    %v254 = vld [vmem:[#allocation2 + $0x308] sm:$0xff]
    %v255 = vld [vmem:[#allocation2 + $0x310] sm:$0xff]
    %v256 = vld [vmem:[#allocation2 + $0x318] sm:$0xff]
    %v257 = vld [vmem:[#allocation2 + $0x320] sm:$0xff]
    %v258 = vld [vmem:[#allocation2 + $0x328] sm:$0xff]
    %v259 = vld [vmem:[#allocation2 + $0x330] sm:$0xff]
    %v260 = vld [vmem:[#allocation2 + $0x338] sm:$0xff]
    %v261 = vld [vmem:[#allocation2 + $0x340] sm:$0xff]
    %v262 = vld [vmem:[#allocation2 + $0x348] sm:$0xff]
    %v263 = vld [vmem:[#allocation2 + $0x350] sm:$0xff]
    %v264 = vld [vmem:[#allocation2 + $0x358] sm:$0xff]
    %v265 = vld [vmem:[#allocation2 + $0x360] sm:$0xff]
    %v266 = vld [vmem:[#allocation2 + $0x368] sm:$0xff]
    %v267 = vld [vmem:[#allocation2 + $0x370] sm:$0xff]
    %v268 = vld [vmem:[#allocation2 + $0x378] sm:$0xff]
    %v269 = vld [vmem:[#allocation2 + $0x380] sm:$0xff]
    %v270 = vld [vmem:[#allocation2 + $0x388] sm:$0xff]
    %v271 = vld [vmem:[#allocation2 + $0x390] sm:$0xff]
    %v272 = vld [vmem:[#allocation2 + $0x398] sm:$0xff]
    %v273 = vld [vmem:[#allocation2 + $0x3a0] sm:$0xff]
    %v274 = vld [vmem:[#allocation2 + $0x3a8] sm:$0xff]
    %v275 = vld [vmem:[#allocation2 + $0x3b0] sm:$0xff]
    %v276 = vld [vmem:[#allocation2 + $0x3b8] sm:$0xff]
    %v277 = vld [vmem:[#allocation2 + $0x3c0] sm:$0xff]
    %v278 = vld [vmem:[#allocation2 + $0x3c8] sm:$0xff]
    %v279 = vld [vmem:[#allocation2 + $0x3d0] sm:$0xff]
    %v280 = vld [vmem:[#allocation2 + $0x3d8] sm:$0xff]
    %v281 = vld [vmem:[#allocation2 + $0x3e0] sm:$0xff]
    %v282 = vld [vmem:[#allocation2 + $0x3e8] sm:$0xff]
    %v283 = vld [vmem:[#allocation2 + $0x3f0] sm:$0xff]
    %v284 = vld [vmem:[#allocation2 + $0x3f8] sm:$0xff]
    %286 = vst [vmem:[#allocation1] ss:$2 sm:$0xff] %v124
    %v287 = vld.sshfl [vmem:[#allocation1] sm:$0xff pattern:$0x75316420]
    %v288 = vld.sshfl [vmem:[#allocation1 + $0x8] sm:$0xff pattern:$0x75316420]
    %v291 = vand.u32 %v217, 4294901760
    %292 = vmatpush.msra.mxu0 %v291
    %v293 = vand.u32 %v213, 4294901760
    %294 = vmatpush.msra.mxu0 %v293
    %v295 = vand.u32 %v209, 4294901760
    %296 = vmatpush.msra.mxu0 %v295
    %v297 = vand.u32 %v205, 4294901760
    %298 = vmatpush.msra.mxu0 %v297
    %v299 = vand.u32 %v201, 4294901760
    %300 = vmatpush.msra.mxu0 %v299
    %v301 = vand.u32 %v197, 4294901760
    %302 = vmatpush.msra.mxu0 %v301
    %v303 = vand.u32 %v193, 4294901760
    %304 = vmatpush.msra.mxu0 %v303
    %v305 = vand.u32 %v189, 4294901760
    %306 = vmatpush.msra.mxu0 %v305
    %v307 = vand.u32 %v185, 4294901760
    %308 = vmatpush.msra.mxu0 %v307
    %v309 = vand.u32 %v181, 4294901760
    %310 = vmatpush.msra.mxu0 %v309
    %v311 = vand.u32 %v177, 4294901760
    %312 = vmatpush.msra.mxu0 %v311
    %v313 = vand.u32 %v173, 4294901760
    %314 = vmatpush.msra.mxu0 %v313
    %v315 = vand.u32 %v169, 4294901760
    %316 = vmatpush.msra.mxu0 %v315
    %v317 = vand.u32 %v165, 4294901760
    %318 = vmatpush.msra.mxu0 %v317
    %v319 = vand.u32 %v161, 4294901760
    %320 = vmatpush.msra.mxu0 %v319
    %v321 = vand.u32 %v157, 4294901760
    %322 = vmatpush.msra.mxu0 %v321
    %v323 = vand.u32 %v287, 4294901760
    %v324 = vsub.f32 %v287, %v323
    %v325 = vand.u32 %v324, 4294901760
    %v326 = vsub.f32 %v324, %v325
    %v327 = vand.u32 %v326, 4294901760
    %328 = vmatmul.f32.gmra.mxu0 %v327
    %v329 = vpop.f32.mrf.mxu0
    %v330 = vadd.f32 0.0, %v329
    %331 = vdwg.mxu0
    %v332 = vand.u32 %v217, 4294901760
    %v333 = vsub.f32 %v217, %v332
    %v334 = vand.u32 %v333, 4294901760
    %v335 = vsub.f32 %v333, %v334
    %v336 = vand.u32 %v335, 4294901760
    %337 = vmatpush.msra.mxu0 %v336
    %v338 = vand.u32 %v213, 4294901760
    %v339 = vsub.f32 %v213, %v338
    %v340 = vand.u32 %v339, 4294901760
    %v341 = vsub.f32 %v339, %v340
    %v342 = vand.u32 %v341, 4294901760
    %343 = vmatpush.msra.mxu0 %v342
    %v344 = vand.u32 %v209, 4294901760
    %v345 = vsub.f32 %v209, %v344
    %v346 = vand.u32 %v345, 4294901760
    %v347 = vsub.f32 %v345, %v346
    %v348 = vand.u32 %v347, 4294901760
    %349 = vmatpush.msra.mxu0 %v348
    %v350 = vand.u32 %v205, 4294901760
    %v351 = vsub.f32 %v205, %v350
    %v352 = vand.u32 %v351, 4294901760
    %v353 = vsub.f32 %v351, %v352
    %v354 = vand.u32 %v353, 4294901760
    %355 = vmatpush.msra.mxu0 %v354
    %v356 = vand.u32 %v201, 4294901760
    %v357 = vsub.f32 %v201, %v356
    %v358 = vand.u32 %v357, 4294901760
    %v359 = vsub.f32 %v357, %v358
    %v360 = vand.u32 %v359, 4294901760
    %361 = vmatpush.msra.mxu0 %v360
    %v362 = vand.u32 %v197, 4294901760
    %v363 = vsub.f32 %v197, %v362
    %v364 = vand.u32 %v363, 4294901760
    %v365 = vsub.f32 %v363, %v364
    %v366 = vand.u32 %v365, 4294901760
    %367 = vmatpush.msra.mxu0 %v366
    %v368 = vand.u32 %v193, 4294901760
    %v369 = vsub.f32 %v193, %v368
    %v370 = vand.u32 %v369, 4294901760
    %v371 = vsub.f32 %v369, %v370
    %v372 = vand.u32 %v371, 4294901760
    %373 = vmatpush.msra.mxu0 %v372
    %v374 = vand.u32 %v189, 4294901760
    %v375 = vsub.f32 %v189, %v374
    %v376 = vand.u32 %v375, 4294901760
    %v377 = vsub.f32 %v375, %v376
    %v378 = vand.u32 %v377, 4294901760
    %379 = vmatpush.msra.mxu0 %v378
    %v380 = vand.u32 %v185, 4294901760
    %v381 = vsub.f32 %v185, %v380
    %v382 = vand.u32 %v381, 4294901760
    %v383 = vsub.f32 %v381, %v382
    %v384 = vand.u32 %v383, 4294901760
    %385 = vmatpush.msra.mxu0 %v384
    %v386 = vand.u32 %v181, 4294901760
    %v387 = vsub.f32 %v181, %v386
    %v388 = vand.u32 %v387, 4294901760
    %v389 = vsub.f32 %v387, %v388
    %v390 = vand.u32 %v389, 4294901760
    %391 = vmatpush.msra.mxu0 %v390
    %v392 = vand.u32 %v177, 4294901760
    %v393 = vsub.f32 %v177, %v392
    %v394 = vand.u32 %v393, 4294901760
    %v395 = vsub.f32 %v393, %v394
    %v396 = vand.u32 %v395, 4294901760
    %397 = vmatpush.msra.mxu0 %v396
    %v398 = vand.u32 %v173, 4294901760
    %v399 = vsub.f32 %v173, %v398
    %v400 = vand.u32 %v399, 4294901760
    %v401 = vsub.f32 %v399, %v400
    %v402 = vand.u32 %v401, 4294901760
    %403 = vmatpush.msra.mxu0 %v402
    %v404 = vand.u32 %v169, 4294901760
    %v405 = vsub.f32 %v169, %v404
    %v406 = vand.u32 %v405, 4294901760
    %v407 = vsub.f32 %v405, %v406
    %v408 = vand.u32 %v407, 4294901760
    %409 = vmatpush.msra.mxu0 %v408
    %v410 = vand.u32 %v165, 4294901760
    %v411 = vsub.f32 %v165, %v410
    %v412 = vand.u32 %v411, 4294901760
    %v413 = vsub.f32 %v411, %v412
    %v414 = vand.u32 %v413, 4294901760
    %415 = vmatpush.msra.mxu0 %v414
    %v416 = vand.u32 %v161, 4294901760
    %v417 = vsub.f32 %v161, %v416
    %v418 = vand.u32 %v417, 4294901760
    %v419 = vsub.f32 %v417, %v418
    %v420 = vand.u32 %v419, 4294901760
    %421 = vmatpush.msra.mxu0 %v420
    %v422 = vand.u32 %v157, 4294901760
    %v423 = vsub.f32 %v157, %v422
    %v424 = vand.u32 %v423, 4294901760
    %v425 = vsub.f32 %v423, %v424
    %v426 = vand.u32 %v425, 4294901760
    %427 = vmatpush.msra.mxu0 %v426
    %v428 = vand.u32 %v287, 4294901760
    %429 = vmatmul.f32.gmra.mxu0 %v428
    %v430 = vpop.f32.mrf.mxu0
    %v431 = vadd.f32 %v330, %v430
    %432 = vdwg.mxu0
    %v433 = vand.u32 %v217, 4294901760
    %v434 = vsub.f32 %v217, %v433
    %435 = vmatpush.msra.mxu0 %v434
    %v436 = vand.u32 %v213, 4294901760
    %v437 = vsub.f32 %v213, %v436
    %438 = vmatpush.msra.mxu0 %v437
    %v439 = vand.u32 %v209, 4294901760
    %v440 = vsub.f32 %v209, %v439
    %441 = vmatpush.msra.mxu0 %v440
    %v442 = vand.u32 %v205, 4294901760
    %v443 = vsub.f32 %v205, %v442
    %444 = vmatpush.msra.mxu0 %v443
    %v445 = vand.u32 %v201, 4294901760
    %v446 = vsub.f32 %v201, %v445
    %447 = vmatpush.msra.mxu0 %v446
    %v448 = vand.u32 %v197, 4294901760
    %v449 = vsub.f32 %v197, %v448
    %450 = vmatpush.msra.mxu0 %v449
    %v451 = vand.u32 %v193, 4294901760
    %v452 = vsub.f32 %v193, %v451
    %453 = vmatpush.msra.mxu0 %v452
    %v454 = vand.u32 %v189, 4294901760
    %v455 = vsub.f32 %v189, %v454
    %456 = vmatpush.msra.mxu0 %v455
    %v457 = vand.u32 %v185, 4294901760
    %v458 = vsub.f32 %v185, %v457
    %459 = vmatpush.msra.mxu0 %v458
    %v460 = vand.u32 %v181, 4294901760
    %v461 = vsub.f32 %v181, %v460
    %462 = vmatpush.msra.mxu0 %v461
    %v463 = vand.u32 %v177, 4294901760
    %v464 = vsub.f32 %v177, %v463
    %465 = vmatpush.msra.mxu0 %v464
    %v466 = vand.u32 %v173, 4294901760
    %v467 = vsub.f32 %v173, %v466
    %468 = vmatpush.msra.mxu0 %v467
    %v469 = vand.u32 %v169, 4294901760
    %v470 = vsub.f32 %v169, %v469
    %471 = vmatpush.msra.mxu0 %v470
    %v472 = vand.u32 %v165, 4294901760
    %v473 = vsub.f32 %v165, %v472
    %474 = vmatpush.msra.mxu0 %v473
    %v475 = vand.u32 %v161, 4294901760
    %v476 = vsub.f32 %v161, %v475
    %477 = vmatpush.msra.mxu0 %v476
    %v478 = vand.u32 %v157, 4294901760
    %v479 = vsub.f32 %v157, %v478
    %480 = vmatpush.msra.mxu0 %v479
    %v481 = vand.u32 %v287, 4294901760
    %v482 = vsub.f32 %v287, %v481
    %483 = vmatmul.f32.gmra.mxu0 %v482
    %v484 = vpop.f32.mrf.mxu0
    %v485 = vadd.f32 %v431, %v484
    %486 = vdwg.mxu0
    %v487 = vand.u32 %v217, 4294901760
    %488 = vmatpush.msra.mxu0 %v487
    %v489 = vand.u32 %v213, 4294901760
    %490 = vmatpush.msra.mxu0 %v489
    %v491 = vand.u32 %v209, 4294901760
    %492 = vmatpush.msra.mxu0 %v491
    %v493 = vand.u32 %v205, 4294901760
    %494 = vmatpush.msra.mxu0 %v493
    %v495 = vand.u32 %v201, 4294901760
    %496 = vmatpush.msra.mxu0 %v495
    %v497 = vand.u32 %v197, 4294901760
    %498 = vmatpush.msra.mxu0 %v497
    %v499 = vand.u32 %v193, 4294901760
    %500 = vmatpush.msra.mxu0 %v499
    %v501 = vand.u32 %v189, 4294901760
    %502 = vmatpush.msra.mxu0 %v501
    %v503 = vand.u32 %v185, 4294901760
    %504 = vmatpush.msra.mxu0 %v503
    %v505 = vand.u32 %v181, 4294901760
    %506 = vmatpush.msra.mxu0 %v505
    %v507 = vand.u32 %v177, 4294901760
    %508 = vmatpush.msra.mxu0 %v507
    %v509 = vand.u32 %v173, 4294901760
    %510 = vmatpush.msra.mxu0 %v509
    %v511 = vand.u32 %v169, 4294901760
    %512 = vmatpush.msra.mxu0 %v511
    %v513 = vand.u32 %v165, 4294901760
    %514 = vmatpush.msra.mxu0 %v513
    %v515 = vand.u32 %v161, 4294901760
    %516 = vmatpush.msra.mxu0 %v515
    %v517 = vand.u32 %v157, 4294901760
    %518 = vmatpush.msra.mxu0 %v517
    %v519 = vand.u32 %v287, 4294901760
    %v520 = vsub.f32 %v287, %v519
    %v521 = vand.u32 %v520, 4294901760
    %522 = vmatmul.f32.gmra.mxu0 %v521
    %v523 = vpop.f32.mrf.mxu0
    %v524 = vadd.f32 %v485, %v523
    %525 = vdwg.mxu0
    %v526 = vand.u32 %v217, 4294901760
    %v527 = vsub.f32 %v217, %v526
    %v528 = vand.u32 %v527, 4294901760
    %529 = vmatpush.msra.mxu0 %v528
    %v530 = vand.u32 %v213, 4294901760
    %v531 = vsub.f32 %v213, %v530
    %v532 = vand.u32 %v531, 4294901760
    %533 = vmatpush.msra.mxu0 %v532
    %v534 = vand.u32 %v209, 4294901760
    %v535 = vsub.f32 %v209, %v534
    %v536 = vand.u32 %v535, 4294901760
    %537 = vmatpush.msra.mxu0 %v536
    %v538 = vand.u32 %v205, 4294901760
    %v539 = vsub.f32 %v205, %v538
    %v540 = vand.u32 %v539, 4294901760
    %541 = vmatpush.msra.mxu0 %v540
    %v542 = vand.u32 %v201, 4294901760
    %v543 = vsub.f32 %v201, %v542
    %v544 = vand.u32 %v543, 4294901760
    %545 = vmatpush.msra.mxu0 %v544
    %v546 = vand.u32 %v197, 4294901760
    %v547 = vsub.f32 %v197, %v546
    %v548 = vand.u32 %v547, 4294901760
    %549 = vmatpush.msra.mxu0 %v548
    %v550 = vand.u32 %v193, 4294901760
    %v551 = vsub.f32 %v193, %v550
    %v552 = vand.u32 %v551, 4294901760
    %553 = vmatpush.msra.mxu0 %v552
    %v554 = vand.u32 %v189, 4294901760
    %v555 = vsub.f32 %v189, %v554
    %v556 = vand.u32 %v555, 4294901760
    %557 = vmatpush.msra.mxu0 %v556
    %v558 = vand.u32 %v185, 4294901760
    %v559 = vsub.f32 %v185, %v558
    %v560 = vand.u32 %v559, 4294901760
    %561 = vmatpush.msra.mxu0 %v560
    %v562 = vand.u32 %v181, 4294901760
    %v563 = vsub.f32 %v181, %v562
    %v564 = vand.u32 %v563, 4294901760
    %565 = vmatpush.msra.mxu0 %v564
    %v566 = vand.u32 %v177, 4294901760
    %v567 = vsub.f32 %v177, %v566
    %v568 = vand.u32 %v567, 4294901760
    %569 = vmatpush.msra.mxu0 %v568
    %v570 = vand.u32 %v173, 4294901760
    %v571 = vsub.f32 %v173, %v570
    %v572 = vand.u32 %v571, 4294901760
    %573 = vmatpush.msra.mxu0 %v572
    %v574 = vand.u32 %v169, 4294901760
    %v575 = vsub.f32 %v169, %v574
    %v576 = vand.u32 %v575, 4294901760
    %577 = vmatpush.msra.mxu0 %v576
    %v578 = vand.u32 %v165, 4294901760
    %v579 = vsub.f32 %v165, %v578
    %v580 = vand.u32 %v579, 4294901760
    %581 = vmatpush.msra.mxu0 %v580
    %v582 = vand.u32 %v161, 4294901760
    %v583 = vsub.f32 %v161, %v582
    %v584 = vand.u32 %v583, 4294901760
    %585 = vmatpush.msra.mxu0 %v584
    %v586 = vand.u32 %v157, 4294901760
    %v587 = vsub.f32 %v157, %v586
    %v588 = vand.u32 %v587, 4294901760
    %589 = vmatpush.msra.mxu0 %v588
    %v590 = vand.u32 %v287, 4294901760
    %591 = vmatmul.f32.gmra.mxu0 %v590
    %v592 = vpop.f32.mrf.mxu0
    %v593 = vadd.f32 %v524, %v592
    %594 = vdwg.mxu0
    %v595 = vand.u32 %v217, 4294901760
    %596 = vmatpush.msra.mxu0 %v595
    %v597 = vand.u32 %v213, 4294901760
    %598 = vmatpush.msra.mxu0 %v597
    %v599 = vand.u32 %v209, 4294901760
    %600 = vmatpush.msra.mxu0 %v599
    %v601 = vand.u32 %v205, 4294901760
    %602 = vmatpush.msra.mxu0 %v601
    %v603 = vand.u32 %v201, 4294901760
    %604 = vmatpush.msra.mxu0 %v603
    %v605 = vand.u32 %v197, 4294901760
    %606 = vmatpush.msra.mxu0 %v605
    %v607 = vand.u32 %v193, 4294901760
    %608 = vmatpush.msra.mxu0 %v607
    %v609 = vand.u32 %v189, 4294901760
    %610 = vmatpush.msra.mxu0 %v609
    %v611 = vand.u32 %v185, 4294901760
    %612 = vmatpush.msra.mxu0 %v611
    %v613 = vand.u32 %v181, 4294901760
    %614 = vmatpush.msra.mxu0 %v613
    %v615 = vand.u32 %v177, 4294901760
    %616 = vmatpush.msra.mxu0 %v615
    %v617 = vand.u32 %v173, 4294901760
    %618 = vmatpush.msra.mxu0 %v617
    %v619 = vand.u32 %v169, 4294901760
    %620 = vmatpush.msra.mxu0 %v619
    %v621 = vand.u32 %v165, 4294901760
    %622 = vmatpush.msra.mxu0 %v621
    %v623 = vand.u32 %v161, 4294901760
    %624 = vmatpush.msra.mxu0 %v623
    %v625 = vand.u32 %v157, 4294901760
    %626 = vmatpush.msra.mxu0 %v625
    %v627 = vand.u32 %v287, 4294901760
    %628 = vmatmul.f32.gmra.mxu0 %v627
    %v629 = vpop.f32.mrf.mxu0
    %v630 = vadd.f32 %v593, %v629
    %631 = vdwg.mxu0
    %v632 = vand.u32 %v281, 4294901760
    %633 = vmatpush.msra.mxu0 %v632
    %v634 = vand.u32 %v277, 4294901760
    %635 = vmatpush.msra.mxu0 %v634
    %v636 = vand.u32 %v273, 4294901760
    %637 = vmatpush.msra.mxu0 %v636
    %v638 = vand.u32 %v269, 4294901760
    %639 = vmatpush.msra.mxu0 %v638
    %v640 = vand.u32 %v265, 4294901760
    %641 = vmatpush.msra.mxu0 %v640
    %v642 = vand.u32 %v261, 4294901760
    %643 = vmatpush.msra.mxu0 %v642
    %v644 = vand.u32 %v257, 4294901760
    %645 = vmatpush.msra.mxu0 %v644
    %v646 = vand.u32 %v253, 4294901760
    %647 = vmatpush.msra.mxu0 %v646
    %v648 = vand.u32 %v249, 4294901760
    %649 = vmatpush.msra.mxu0 %v648
    %v650 = vand.u32 %v245, 4294901760
    %651 = vmatpush.msra.mxu0 %v650
    %v652 = vand.u32 %v241, 4294901760
    %653 = vmatpush.msra.mxu0 %v652
    %v654 = vand.u32 %v237, 4294901760
    %655 = vmatpush.msra.mxu0 %v654
    %v656 = vand.u32 %v233, 4294901760
    %657 = vmatpush.msra.mxu0 %v656
    %v658 = vand.u32 %v229, 4294901760
    %659 = vmatpush.msra.mxu0 %v658
    %v660 = vand.u32 %v225, 4294901760
    %661 = vmatpush.msra.mxu0 %v660
    %v662 = vand.u32 %v221, 4294901760
    %663 = vmatpush.msra.mxu0 %v662
    %v664 = vand.u32 %v288, 4294901760
    %v665 = vsub.f32 %v288, %v664
    %v666 = vand.u32 %v665, 4294901760
    %v667 = vsub.f32 %v665, %v666
    %v668 = vand.u32 %v667, 4294901760
    %669 = vmatmul.f32.gmra.mxu0 %v668
    %v670 = vpop.f32.mrf.mxu0
    %v671 = vadd.f32 %v630, %v670
    %672 = vdwg.mxu0
    %v673 = vand.u32 %v281, 4294901760
    %v674 = vsub.f32 %v281, %v673
    %v675 = vand.u32 %v674, 4294901760
    %v676 = vsub.f32 %v674, %v675
    %v677 = vand.u32 %v676, 4294901760
    %678 = vmatpush.msra.mxu0 %v677
    %v679 = vand.u32 %v277, 4294901760
    %v680 = vsub.f32 %v277, %v679
    %v681 = vand.u32 %v680, 4294901760
    %v682 = vsub.f32 %v680, %v681
    %v683 = vand.u32 %v682, 4294901760
    %684 = vmatpush.msra.mxu0 %v683
    %v685 = vand.u32 %v273, 4294901760
    %v686 = vsub.f32 %v273, %v685
    %v687 = vand.u32 %v686, 4294901760
    %v688 = vsub.f32 %v686, %v687
    %v689 = vand.u32 %v688, 4294901760
    %690 = vmatpush.msra.mxu0 %v689
    %v691 = vand.u32 %v269, 4294901760
    %v692 = vsub.f32 %v269, %v691
    %v693 = vand.u32 %v692, 4294901760
    %v694 = vsub.f32 %v692, %v693
    %v695 = vand.u32 %v694, 4294901760
    %696 = vmatpush.msra.mxu0 %v695
    %v697 = vand.u32 %v265, 4294901760
    %v698 = vsub.f32 %v265, %v697
    %v699 = vand.u32 %v698, 4294901760
    %v700 = vsub.f32 %v698, %v699
    %v701 = vand.u32 %v700, 4294901760
    %702 = vmatpush.msra.mxu0 %v701
    %v703 = vand.u32 %v261, 4294901760
    %v704 = vsub.f32 %v261, %v703
    %v705 = vand.u32 %v704, 4294901760
    %v706 = vsub.f32 %v704, %v705
    %v707 = vand.u32 %v706, 4294901760
    %708 = vmatpush.msra.mxu0 %v707
    %v709 = vand.u32 %v257, 4294901760
    %v710 = vsub.f32 %v257, %v709
    %v711 = vand.u32 %v710, 4294901760
    %v712 = vsub.f32 %v710, %v711
    %v713 = vand.u32 %v712, 4294901760
    %714 = vmatpush.msra.mxu0 %v713
    %v715 = vand.u32 %v253, 4294901760
    %v716 = vsub.f32 %v253, %v715
    %v717 = vand.u32 %v716, 4294901760
    %v718 = vsub.f32 %v716, %v717
    %v719 = vand.u32 %v718, 4294901760
    %720 = vmatpush.msra.mxu0 %v719
    %v721 = vand.u32 %v249, 4294901760
    %v722 = vsub.f32 %v249, %v721
    %v723 = vand.u32 %v722, 4294901760
    %v724 = vsub.f32 %v722, %v723
    %v725 = vand.u32 %v724, 4294901760
    %726 = vmatpush.msra.mxu0 %v725
    %v727 = vand.u32 %v245, 4294901760
    %v728 = vsub.f32 %v245, %v727
    %v729 = vand.u32 %v728, 4294901760
    %v730 = vsub.f32 %v728, %v729
    %v731 = vand.u32 %v730, 4294901760
    %732 = vmatpush.msra.mxu0 %v731
    %v733 = vand.u32 %v241, 4294901760
    %v734 = vsub.f32 %v241, %v733
    %v735 = vand.u32 %v734, 4294901760
    %v736 = vsub.f32 %v734, %v735
    %v737 = vand.u32 %v736, 4294901760
    %738 = vmatpush.msra.mxu0 %v737
    %v739 = vand.u32 %v237, 4294901760
    %v740 = vsub.f32 %v237, %v739
    %v741 = vand.u32 %v740, 4294901760
    %v742 = vsub.f32 %v740, %v741
    %v743 = vand.u32 %v742, 4294901760
    %744 = vmatpush.msra.mxu0 %v743
    %v745 = vand.u32 %v233, 4294901760
    %v746 = vsub.f32 %v233, %v745
    %v747 = vand.u32 %v746, 4294901760
    %v748 = vsub.f32 %v746, %v747
    %v749 = vand.u32 %v748, 4294901760
    %750 = vmatpush.msra.mxu0 %v749
    %v751 = vand.u32 %v229, 4294901760
    %v752 = vsub.f32 %v229, %v751
    %v753 = vand.u32 %v752, 4294901760
    %v754 = vsub.f32 %v752, %v753
    %v755 = vand.u32 %v754, 4294901760
    %756 = vmatpush.msra.mxu0 %v755
    %v757 = vand.u32 %v225, 4294901760
    %v758 = vsub.f32 %v225, %v757
    %v759 = vand.u32 %v758, 4294901760
    %v760 = vsub.f32 %v758, %v759
    %v761 = vand.u32 %v760, 4294901760
    %762 = vmatpush.msra.mxu0 %v761
    %v763 = vand.u32 %v221, 4294901760
    %v764 = vsub.f32 %v221, %v763
    %v765 = vand.u32 %v764, 4294901760
    %v766 = vsub.f32 %v764, %v765
    %v767 = vand.u32 %v766, 4294901760
    %768 = vmatpush.msra.mxu0 %v767
    %v769 = vand.u32 %v288, 4294901760
    %770 = vmatmul.f32.gmra.mxu0 %v769
    %v771 = vpop.f32.mrf.mxu0
    %v772 = vadd.f32 %v671, %v771
    %773 = vdwg.mxu0
    %v774 = vand.u32 %v281, 4294901760
    %v775 = vsub.f32 %v281, %v774
    %776 = vmatpush.msra.mxu0 %v775
    %v777 = vand.u32 %v277, 4294901760
    %v778 = vsub.f32 %v277, %v777
    %779 = vmatpush.msra.mxu0 %v778
    %v780 = vand.u32 %v273, 4294901760
    %v781 = vsub.f32 %v273, %v780
    %782 = vmatpush.msra.mxu0 %v781
    %v783 = vand.u32 %v269, 4294901760
    %v784 = vsub.f32 %v269, %v783
    %785 = vmatpush.msra.mxu0 %v784
    %v786 = vand.u32 %v265, 4294901760
    %v787 = vsub.f32 %v265, %v786
    %788 = vmatpush.msra.mxu0 %v787
    %v789 = vand.u32 %v261, 4294901760
    %v790 = vsub.f32 %v261, %v789
    %791 = vmatpush.msra.mxu0 %v790
    %v792 = vand.u32 %v257, 4294901760
    %v793 = vsub.f32 %v257, %v792
    %794 = vmatpush.msra.mxu0 %v793
    %v795 = vand.u32 %v253, 4294901760
    %v796 = vsub.f32 %v253, %v795
    %797 = vmatpush.msra.mxu0 %v796
    %v798 = vand.u32 %v249, 4294901760
    %v799 = vsub.f32 %v249, %v798
    %800 = vmatpush.msra.mxu0 %v799
    %v801 = vand.u32 %v245, 4294901760
    %v802 = vsub.f32 %v245, %v801
    %803 = vmatpush.msra.mxu0 %v802
    %v804 = vand.u32 %v241, 4294901760
    %v805 = vsub.f32 %v241, %v804
    %806 = vmatpush.msra.mxu0 %v805
    %v807 = vand.u32 %v237, 4294901760
    %v808 = vsub.f32 %v237, %v807
    %809 = vmatpush.msra.mxu0 %v808
    %v810 = vand.u32 %v233, 4294901760
    %v811 = vsub.f32 %v233, %v810
    %812 = vmatpush.msra.mxu0 %v811
    %v813 = vand.u32 %v229, 4294901760
    %v814 = vsub.f32 %v229, %v813
    %815 = vmatpush.msra.mxu0 %v814
    %v816 = vand.u32 %v225, 4294901760
    %v817 = vsub.f32 %v225, %v816
    %818 = vmatpush.msra.mxu0 %v817
    %v819 = vand.u32 %v221, 4294901760
    %v820 = vsub.f32 %v221, %v819
    %821 = vmatpush.msra.mxu0 %v820
    %v822 = vand.u32 %v288, 4294901760
    %v823 = vsub.f32 %v288, %v822
    %824 = vmatmul.f32.gmra.mxu0 %v823
    %v825 = vpop.f32.mrf.mxu0
    %v826 = vadd.f32 %v772, %v825
    %827 = vdwg.mxu0
    %v828 = vand.u32 %v281, 4294901760
    %829 = vmatpush.msra.mxu0 %v828
    %v830 = vand.u32 %v277, 4294901760
    %831 = vmatpush.msra.mxu0 %v830
    %v832 = vand.u32 %v273, 4294901760
    %833 = vmatpush.msra.mxu0 %v832
    %v834 = vand.u32 %v269, 4294901760
    %835 = vmatpush.msra.mxu0 %v834
    %v836 = vand.u32 %v265, 4294901760
    %837 = vmatpush.msra.mxu0 %v836
    %v838 = vand.u32 %v261, 4294901760
    %839 = vmatpush.msra.mxu0 %v838
    %v840 = vand.u32 %v257, 4294901760
    %841 = vmatpush.msra.mxu0 %v840
    %v842 = vand.u32 %v253, 4294901760
    %843 = vmatpush.msra.mxu0 %v842
    %v844 = vand.u32 %v249, 4294901760
    %845 = vmatpush.msra.mxu0 %v844
    %v846 = vand.u32 %v245, 4294901760
    %847 = vmatpush.msra.mxu0 %v846
    %v848 = vand.u32 %v241, 4294901760
    %849 = vmatpush.msra.mxu0 %v848
    %v850 = vand.u32 %v237, 4294901760
    %851 = vmatpush.msra.mxu0 %v850
    %v852 = vand.u32 %v233, 4294901760
    %853 = vmatpush.msra.mxu0 %v852
    %v854 = vand.u32 %v229, 4294901760
    %855 = vmatpush.msra.mxu0 %v854
    %v856 = vand.u32 %v225, 4294901760
    %857 = vmatpush.msra.mxu0 %v856
    %v858 = vand.u32 %v221, 4294901760
    %859 = vmatpush.msra.mxu0 %v858
    %v860 = vand.u32 %v288, 4294901760
    %v861 = vsub.f32 %v288, %v860
    %v862 = vand.u32 %v861, 4294901760
    %863 = vmatmul.f32.gmra.mxu0 %v862
    %v864 = vpop.f32.mrf.mxu0
    %v865 = vadd.f32 %v826, %v864
    %866 = vdwg.mxu0
    %v867 = vand.u32 %v281, 4294901760
    %v868 = vsub.f32 %v281, %v867
    %v869 = vand.u32 %v868, 4294901760
    %870 = vmatpush.msra.mxu0 %v869
    %v871 = vand.u32 %v277, 4294901760
    %v872 = vsub.f32 %v277, %v871
    %v873 = vand.u32 %v872, 4294901760
    %874 = vmatpush.msra.mxu0 %v873
    %v875 = vand.u32 %v273, 4294901760
    %v876 = vsub.f32 %v273, %v875
    %v877 = vand.u32 %v876, 4294901760
    %878 = vmatpush.msra.mxu0 %v877
    %v879 = vand.u32 %v269, 4294901760
    %v880 = vsub.f32 %v269, %v879
    %v881 = vand.u32 %v880, 4294901760
    %882 = vmatpush.msra.mxu0 %v881
    %v883 = vand.u32 %v265, 4294901760
    %v884 = vsub.f32 %v265, %v883
    %v885 = vand.u32 %v884, 4294901760
    %886 = vmatpush.msra.mxu0 %v885
    %v887 = vand.u32 %v261, 4294901760
    %v888 = vsub.f32 %v261, %v887
    %v889 = vand.u32 %v888, 4294901760
    %890 = vmatpush.msra.mxu0 %v889
    %v891 = vand.u32 %v257, 4294901760
    %v892 = vsub.f32 %v257, %v891
    %v893 = vand.u32 %v892, 4294901760
    %894 = vmatpush.msra.mxu0 %v893
    %v895 = vand.u32 %v253, 4294901760
    %v896 = vsub.f32 %v253, %v895
    %v897 = vand.u32 %v896, 4294901760
    %898 = vmatpush.msra.mxu0 %v897
    %v899 = vand.u32 %v249, 4294901760
    %v900 = vsub.f32 %v249, %v899
    %v901 = vand.u32 %v900, 4294901760
    %902 = vmatpush.msra.mxu0 %v901
    %v903 = vand.u32 %v245, 4294901760
    %v904 = vsub.f32 %v245, %v903
    %v905 = vand.u32 %v904, 4294901760
    %906 = vmatpush.msra.mxu0 %v905
    %v907 = vand.u32 %v241, 4294901760
    %v908 = vsub.f32 %v241, %v907
    %v909 = vand.u32 %v908, 4294901760
    %910 = vmatpush.msra.mxu0 %v909
    %v911 = vand.u32 %v237, 4294901760
    %v912 = vsub.f32 %v237, %v911
    %v913 = vand.u32 %v912, 4294901760
    %914 = vmatpush.msra.mxu0 %v913
    %v915 = vand.u32 %v233, 4294901760
    %v916 = vsub.f32 %v233, %v915
    %v917 = vand.u32 %v916, 4294901760
    %918 = vmatpush.msra.mxu0 %v917
    %v919 = vand.u32 %v229, 4294901760
    %v920 = vsub.f32 %v229, %v919
    %v921 = vand.u32 %v920, 4294901760
    %922 = vmatpush.msra.mxu0 %v921
    %v923 = vand.u32 %v225, 4294901760
    %v924 = vsub.f32 %v225, %v923
    %v925 = vand.u32 %v924, 4294901760
    %926 = vmatpush.msra.mxu0 %v925
    %v927 = vand.u32 %v221, 4294901760
    %v928 = vsub.f32 %v221, %v927
    %v929 = vand.u32 %v928, 4294901760
    %930 = vmatpush.msra.mxu0 %v929
    %v931 = vand.u32 %v288, 4294901760
    %932 = vmatmul.f32.gmra.mxu0 %v931
    %v933 = vpop.f32.mrf.mxu0
    %v934 = vadd.f32 %v865, %v933
    %935 = vdwg.mxu0
    %v936 = vand.u32 %v281, 4294901760
    %937 = vmatpush.msra.mxu0 %v936
    %v938 = vand.u32 %v277, 4294901760
    %939 = vmatpush.msra.mxu0 %v938
    %v940 = vand.u32 %v273, 4294901760
    %941 = vmatpush.msra.mxu0 %v940
    %v942 = vand.u32 %v269, 4294901760
    %943 = vmatpush.msra.mxu0 %v942
    %v944 = vand.u32 %v265, 4294901760
    %945 = vmatpush.msra.mxu0 %v944
    %v946 = vand.u32 %v261, 4294901760
    %947 = vmatpush.msra.mxu0 %v946
    %v948 = vand.u32 %v257, 4294901760
    %949 = vmatpush.msra.mxu0 %v948
    %v950 = vand.u32 %v253, 4294901760
    %951 = vmatpush.msra.mxu0 %v950
    %v952 = vand.u32 %v249, 4294901760
    %953 = vmatpush.msra.mxu0 %v952
    %v954 = vand.u32 %v245, 4294901760
    %955 = vmatpush.msra.mxu0 %v954
    %v956 = vand.u32 %v241, 4294901760
    %957 = vmatpush.msra.mxu0 %v956
    %v958 = vand.u32 %v237, 4294901760
    %959 = vmatpush.msra.mxu0 %v958
    %v960 = vand.u32 %v233, 4294901760
    %961 = vmatpush.msra.mxu0 %v960
    %v962 = vand.u32 %v229, 4294901760
    %963 = vmatpush.msra.mxu0 %v962
    %v964 = vand.u32 %v225, 4294901760
    %965 = vmatpush.msra.mxu0 %v964
    %v966 = vand.u32 %v221, 4294901760
    %967 = vmatpush.msra.mxu0 %v966
    %v968 = vand.u32 %v288, 4294901760
    %969 = vmatmul.f32.gmra.mxu0 %v968
    %v970 = vpop.f32.mrf.mxu0
    %v971 = vadd.f32 %v934, %v970
    %972 = vdwg.mxu0
    %v973 = vand.u32 %v218, 4294901760
    %974 = vmatpush.msra.mxu0 %v973
    %v975 = vand.u32 %v214, 4294901760
    %976 = vmatpush.msra.mxu0 %v975
    %v977 = vand.u32 %v210, 4294901760
    %978 = vmatpush.msra.mxu0 %v977
    %v979 = vand.u32 %v206, 4294901760
    %980 = vmatpush.msra.mxu0 %v979
    %v981 = vand.u32 %v202, 4294901760
    %982 = vmatpush.msra.mxu0 %v981
    %v983 = vand.u32 %v198, 4294901760
    %984 = vmatpush.msra.mxu0 %v983
    %v985 = vand.u32 %v194, 4294901760
    %986 = vmatpush.msra.mxu0 %v985
    %v987 = vand.u32 %v190, 4294901760
    %988 = vmatpush.msra.mxu0 %v987
    %v989 = vand.u32 %v186, 4294901760
    %990 = vmatpush.msra.mxu0 %v989
    %v991 = vand.u32 %v182, 4294901760
    %992 = vmatpush.msra.mxu0 %v991
    %v993 = vand.u32 %v178, 4294901760
    %994 = vmatpush.msra.mxu0 %v993
    %v995 = vand.u32 %v174, 4294901760
    %996 = vmatpush.msra.mxu0 %v995
    %v997 = vand.u32 %v170, 4294901760
    %998 = vmatpush.msra.mxu0 %v997
    %v999 = vand.u32 %v166, 4294901760
    %1000 = vmatpush.msra.mxu0 %v999
    %v1001 = vand.u32 %v162, 4294901760
    %1002 = vmatpush.msra.mxu0 %v1001
    %v1003 = vand.u32 %v158, 4294901760
    %1004 = vmatpush.msra.mxu0 %v1003
    %v1005 = vand.u32 %v287, 4294901760
    %v1006 = vsub.f32 %v287, %v1005
    %v1007 = vand.u32 %v1006, 4294901760
    %v1008 = vsub.f32 %v1006, %v1007
    %v1009 = vand.u32 %v1008, 4294901760
    %1010 = vmatmul.f32.gmra.mxu0 %v1009
    %v1011 = vpop.f32.mrf.mxu0
    %v1012 = vadd.f32 0.0, %v1011
    %1013 = vdwg.mxu0
    %v1014 = vand.u32 %v218, 4294901760
    %v1015 = vsub.f32 %v218, %v1014
    %v1016 = vand.u32 %v1015, 4294901760
    %v1017 = vsub.f32 %v1015, %v1016
    %v1018 = vand.u32 %v1017, 4294901760
    %1019 = vmatpush.msra.mxu0 %v1018
    %v1020 = vand.u32 %v214, 4294901760
    %v1021 = vsub.f32 %v214, %v1020
    %v1022 = vand.u32 %v1021, 4294901760
    %v1023 = vsub.f32 %v1021, %v1022
    %v1024 = vand.u32 %v1023, 4294901760
    %1025 = vmatpush.msra.mxu0 %v1024
    %v1026 = vand.u32 %v210, 4294901760
    %v1027 = vsub.f32 %v210, %v1026
    %v1028 = vand.u32 %v1027, 4294901760
    %v1029 = vsub.f32 %v1027, %v1028
    %v1030 = vand.u32 %v1029, 4294901760
    %1031 = vmatpush.msra.mxu0 %v1030
    %v1032 = vand.u32 %v206, 4294901760
    %v1033 = vsub.f32 %v206, %v1032
    %v1034 = vand.u32 %v1033, 4294901760
    %v1035 = vsub.f32 %v1033, %v1034
    %v1036 = vand.u32 %v1035, 4294901760
    %1037 = vmatpush.msra.mxu0 %v1036
    %v1038 = vand.u32 %v202, 4294901760
    %v1039 = vsub.f32 %v202, %v1038
    %v1040 = vand.u32 %v1039, 4294901760
    %v1041 = vsub.f32 %v1039, %v1040
    %v1042 = vand.u32 %v1041, 4294901760
    %1043 = vmatpush.msra.mxu0 %v1042
    %v1044 = vand.u32 %v198, 4294901760
    %v1045 = vsub.f32 %v198, %v1044
    %v1046 = vand.u32 %v1045, 4294901760
    %v1047 = vsub.f32 %v1045, %v1046
    %v1048 = vand.u32 %v1047, 4294901760
    %1049 = vmatpush.msra.mxu0 %v1048
    %v1050 = vand.u32 %v194, 4294901760
    %v1051 = vsub.f32 %v194, %v1050
    %v1052 = vand.u32 %v1051, 4294901760
    %v1053 = vsub.f32 %v1051, %v1052
    %v1054 = vand.u32 %v1053, 4294901760
    %1055 = vmatpush.msra.mxu0 %v1054
    %v1056 = vand.u32 %v190, 4294901760
    %v1057 = vsub.f32 %v190, %v1056
    %v1058 = vand.u32 %v1057, 4294901760
    %v1059 = vsub.f32 %v1057, %v1058
    %v1060 = vand.u32 %v1059, 4294901760
    %1061 = vmatpush.msra.mxu0 %v1060
    %v1062 = vand.u32 %v186, 4294901760
    %v1063 = vsub.f32 %v186, %v1062
    %v1064 = vand.u32 %v1063, 4294901760
    %v1065 = vsub.f32 %v1063, %v1064
    %v1066 = vand.u32 %v1065, 4294901760
    %1067 = vmatpush.msra.mxu0 %v1066
    %v1068 = vand.u32 %v182, 4294901760
    %v1069 = vsub.f32 %v182, %v1068
    %v1070 = vand.u32 %v1069, 4294901760
    %v1071 = vsub.f32 %v1069, %v1070
    %v1072 = vand.u32 %v1071, 4294901760
    %1073 = vmatpush.msra.mxu0 %v1072
    %v1074 = vand.u32 %v178, 4294901760
    %v1075 = vsub.f32 %v178, %v1074
    %v1076 = vand.u32 %v1075, 4294901760
    %v1077 = vsub.f32 %v1075, %v1076
    %v1078 = vand.u32 %v1077, 4294901760
    %1079 = vmatpush.msra.mxu0 %v1078
    %v1080 = vand.u32 %v174, 4294901760
    %v1081 = vsub.f32 %v174, %v1080
    %v1082 = vand.u32 %v1081, 4294901760
    %v1083 = vsub.f32 %v1081, %v1082
    %v1084 = vand.u32 %v1083, 4294901760
    %1085 = vmatpush.msra.mxu0 %v1084
    %v1086 = vand.u32 %v170, 4294901760
    %v1087 = vsub.f32 %v170, %v1086
    %v1088 = vand.u32 %v1087, 4294901760
    %v1089 = vsub.f32 %v1087, %v1088
    %v1090 = vand.u32 %v1089, 4294901760
    %1091 = vmatpush.msra.mxu0 %v1090
    %v1092 = vand.u32 %v166, 4294901760
    %v1093 = vsub.f32 %v166, %v1092
    %v1094 = vand.u32 %v1093, 4294901760
    %v1095 = vsub.f32 %v1093, %v1094
    %v1096 = vand.u32 %v1095, 4294901760
    %1097 = vmatpush.msra.mxu0 %v1096
    %v1098 = vand.u32 %v162, 4294901760
    %v1099 = vsub.f32 %v162, %v1098
    %v1100 = vand.u32 %v1099, 4294901760
    %v1101 = vsub.f32 %v1099, %v1100
    %v1102 = vand.u32 %v1101, 4294901760
    %1103 = vmatpush.msra.mxu0 %v1102
    %v1104 = vand.u32 %v158, 4294901760
    %v1105 = vsub.f32 %v158, %v1104
    %v1106 = vand.u32 %v1105, 4294901760
    %v1107 = vsub.f32 %v1105, %v1106
    %v1108 = vand.u32 %v1107, 4294901760
    %1109 = vmatpush.msra.mxu0 %v1108
    %v1110 = vand.u32 %v287, 4294901760
    %1111 = vmatmul.f32.gmra.mxu0 %v1110
    %v1112 = vpop.f32.mrf.mxu0
    %v1113 = vadd.f32 %v1012, %v1112
    %1114 = vdwg.mxu0
    %v1115 = vand.u32 %v218, 4294901760
    %v1116 = vsub.f32 %v218, %v1115
    %1117 = vmatpush.msra.mxu0 %v1116
    %v1118 = vand.u32 %v214, 4294901760
    %v1119 = vsub.f32 %v214, %v1118
    %1120 = vmatpush.msra.mxu0 %v1119
    %v1121 = vand.u32 %v210, 4294901760
    %v1122 = vsub.f32 %v210, %v1121
    %1123 = vmatpush.msra.mxu0 %v1122
    %v1124 = vand.u32 %v206, 4294901760
    %v1125 = vsub.f32 %v206, %v1124
    %1126 = vmatpush.msra.mxu0 %v1125
    %v1127 = vand.u32 %v202, 4294901760
    %v1128 = vsub.f32 %v202, %v1127
    %1129 = vmatpush.msra.mxu0 %v1128
    %v1130 = vand.u32 %v198, 4294901760
    %v1131 = vsub.f32 %v198, %v1130
    %1132 = vmatpush.msra.mxu0 %v1131
    %v1133 = vand.u32 %v194, 4294901760
    %v1134 = vsub.f32 %v194, %v1133
    %1135 = vmatpush.msra.mxu0 %v1134
    %v1136 = vand.u32 %v190, 4294901760
    %v1137 = vsub.f32 %v190, %v1136
    %1138 = vmatpush.msra.mxu0 %v1137
    %v1139 = vand.u32 %v186, 4294901760
    %v1140 = vsub.f32 %v186, %v1139
    %1141 = vmatpush.msra.mxu0 %v1140
    %v1142 = vand.u32 %v182, 4294901760
    %v1143 = vsub.f32 %v182, %v1142
    %1144 = vmatpush.msra.mxu0 %v1143
    %v1145 = vand.u32 %v178, 4294901760
    %v1146 = vsub.f32 %v178, %v1145
    %1147 = vmatpush.msra.mxu0 %v1146
    %v1148 = vand.u32 %v174, 4294901760
    %v1149 = vsub.f32 %v174, %v1148
    %1150 = vmatpush.msra.mxu0 %v1149
    %v1151 = vand.u32 %v170, 4294901760
    %v1152 = vsub.f32 %v170, %v1151
    %1153 = vmatpush.msra.mxu0 %v1152
    %v1154 = vand.u32 %v166, 4294901760
    %v1155 = vsub.f32 %v166, %v1154
    %1156 = vmatpush.msra.mxu0 %v1155
    %v1157 = vand.u32 %v162, 4294901760
    %v1158 = vsub.f32 %v162, %v1157
    %1159 = vmatpush.msra.mxu0 %v1158
    %v1160 = vand.u32 %v158, 4294901760
    %v1161 = vsub.f32 %v158, %v1160
    %1162 = vmatpush.msra.mxu0 %v1161
    %v1163 = vand.u32 %v287, 4294901760
    %v1164 = vsub.f32 %v287, %v1163
    %1165 = vmatmul.f32.gmra.mxu0 %v1164
    %v1166 = vpop.f32.mrf.mxu0
    %v1167 = vadd.f32 %v1113, %v1166
    %1168 = vdwg.mxu0
    %v1169 = vand.u32 %v218, 4294901760
    %1170 = vmatpush.msra.mxu0 %v1169
    %v1171 = vand.u32 %v214, 4294901760
    %1172 = vmatpush.msra.mxu0 %v1171
    %v1173 = vand.u32 %v210, 4294901760
    %1174 = vmatpush.msra.mxu0 %v1173
    %v1175 = vand.u32 %v206, 4294901760
    %1176 = vmatpush.msra.mxu0 %v1175
    %v1177 = vand.u32 %v202, 4294901760
    %1178 = vmatpush.msra.mxu0 %v1177
    %v1179 = vand.u32 %v198, 4294901760
    %1180 = vmatpush.msra.mxu0 %v1179
    %v1181 = vand.u32 %v194, 4294901760
    %1182 = vmatpush.msra.mxu0 %v1181
    %v1183 = vand.u32 %v190, 4294901760
    %1184 = vmatpush.msra.mxu0 %v1183
    %v1185 = vand.u32 %v186, 4294901760
    %1186 = vmatpush.msra.mxu0 %v1185
    %v1187 = vand.u32 %v182, 4294901760
    %1188 = vmatpush.msra.mxu0 %v1187
    %v1189 = vand.u32 %v178, 4294901760
    %1190 = vmatpush.msra.mxu0 %v1189
    %v1191 = vand.u32 %v174, 4294901760
    %1192 = vmatpush.msra.mxu0 %v1191
    %v1193 = vand.u32 %v170, 4294901760
    %1194 = vmatpush.msra.mxu0 %v1193
    %v1195 = vand.u32 %v166, 4294901760
    %1196 = vmatpush.msra.mxu0 %v1195
    %v1197 = vand.u32 %v162, 4294901760
    %1198 = vmatpush.msra.mxu0 %v1197
    %v1199 = vand.u32 %v158, 4294901760
    %1200 = vmatpush.msra.mxu0 %v1199
    %v1201 = vand.u32 %v287, 4294901760
    %v1202 = vsub.f32 %v287, %v1201
    %v1203 = vand.u32 %v1202, 4294901760
    %1204 = vmatmul.f32.gmra.mxu0 %v1203
    %v1205 = vpop.f32.mrf.mxu0
    %v1206 = vadd.f32 %v1167, %v1205
    %1207 = vdwg.mxu0
    %v1208 = vand.u32 %v218, 4294901760
    %v1209 = vsub.f32 %v218, %v1208
    %v1210 = vand.u32 %v1209, 4294901760
    %1211 = vmatpush.msra.mxu0 %v1210
    %v1212 = vand.u32 %v214, 4294901760
    %v1213 = vsub.f32 %v214, %v1212
    %v1214 = vand.u32 %v1213, 4294901760
    %1215 = vmatpush.msra.mxu0 %v1214
    %v1216 = vand.u32 %v210, 4294901760
    %v1217 = vsub.f32 %v210, %v1216
    %v1218 = vand.u32 %v1217, 4294901760
    %1219 = vmatpush.msra.mxu0 %v1218
    %v1220 = vand.u32 %v206, 4294901760
    %v1221 = vsub.f32 %v206, %v1220
    %v1222 = vand.u32 %v1221, 4294901760
    %1223 = vmatpush.msra.mxu0 %v1222
    %v1224 = vand.u32 %v202, 4294901760
    %v1225 = vsub.f32 %v202, %v1224
    %v1226 = vand.u32 %v1225, 4294901760
    %1227 = vmatpush.msra.mxu0 %v1226
    %v1228 = vand.u32 %v198, 4294901760
    %v1229 = vsub.f32 %v198, %v1228
    %v1230 = vand.u32 %v1229, 4294901760
    %1231 = vmatpush.msra.mxu0 %v1230
    %v1232 = vand.u32 %v194, 4294901760
    %v1233 = vsub.f32 %v194, %v1232
    %v1234 = vand.u32 %v1233, 4294901760
    %1235 = vmatpush.msra.mxu0 %v1234
    %v1236 = vand.u32 %v190, 4294901760
    %v1237 = vsub.f32 %v190, %v1236
    %v1238 = vand.u32 %v1237, 4294901760
    %1239 = vmatpush.msra.mxu0 %v1238
    %v1240 = vand.u32 %v186, 4294901760
    %v1241 = vsub.f32 %v186, %v1240
    %v1242 = vand.u32 %v1241, 4294901760
    %1243 = vmatpush.msra.mxu0 %v1242
    %v1244 = vand.u32 %v182, 4294901760
    %v1245 = vsub.f32 %v182, %v1244
    %v1246 = vand.u32 %v1245, 4294901760
    %1247 = vmatpush.msra.mxu0 %v1246
    %v1248 = vand.u32 %v178, 4294901760
    %v1249 = vsub.f32 %v178, %v1248
    %v1250 = vand.u32 %v1249, 4294901760
    %1251 = vmatpush.msra.mxu0 %v1250
    %v1252 = vand.u32 %v174, 4294901760
    %v1253 = vsub.f32 %v174, %v1252
    %v1254 = vand.u32 %v1253, 4294901760
    %1255 = vmatpush.msra.mxu0 %v1254
    %v1256 = vand.u32 %v170, 4294901760
    %v1257 = vsub.f32 %v170, %v1256
    %v1258 = vand.u32 %v1257, 4294901760
    %1259 = vmatpush.msra.mxu0 %v1258
    %v1260 = vand.u32 %v166, 4294901760
    %v1261 = vsub.f32 %v166, %v1260
    %v1262 = vand.u32 %v1261, 4294901760
    %1263 = vmatpush.msra.mxu0 %v1262
    %v1264 = vand.u32 %v162, 4294901760
    %v1265 = vsub.f32 %v162, %v1264
    %v1266 = vand.u32 %v1265, 4294901760
    %1267 = vmatpush.msra.mxu0 %v1266
    %v1268 = vand.u32 %v158, 4294901760
    %v1269 = vsub.f32 %v158, %v1268
    %v1270 = vand.u32 %v1269, 4294901760
    %1271 = vmatpush.msra.mxu0 %v1270
    %v1272 = vand.u32 %v287, 4294901760
    %1273 = vmatmul.f32.gmra.mxu0 %v1272
    %v1274 = vpop.f32.mrf.mxu0
    %v1275 = vadd.f32 %v1206, %v1274
    %1276 = vdwg.mxu0
    %v1277 = vand.u32 %v218, 4294901760
    %1278 = vmatpush.msra.mxu0 %v1277
    %v1279 = vand.u32 %v214, 4294901760
    %1280 = vmatpush.msra.mxu0 %v1279
    %v1281 = vand.u32 %v210, 4294901760
    %1282 = vmatpush.msra.mxu0 %v1281
    %v1283 = vand.u32 %v206, 4294901760
    %1284 = vmatpush.msra.mxu0 %v1283
    %v1285 = vand.u32 %v202, 4294901760
    %1286 = vmatpush.msra.mxu0 %v1285
    %v1287 = vand.u32 %v198, 4294901760
    %1288 = vmatpush.msra.mxu0 %v1287
    %v1289 = vand.u32 %v194, 4294901760
    %1290 = vmatpush.msra.mxu0 %v1289
    %v1291 = vand.u32 %v190, 4294901760
    %1292 = vmatpush.msra.mxu0 %v1291
    %v1293 = vand.u32 %v186, 4294901760
    %1294 = vmatpush.msra.mxu0 %v1293
    %v1295 = vand.u32 %v182, 4294901760
    %1296 = vmatpush.msra.mxu0 %v1295
    %v1297 = vand.u32 %v178, 4294901760
    %1298 = vmatpush.msra.mxu0 %v1297
    %v1299 = vand.u32 %v174, 4294901760
    %1300 = vmatpush.msra.mxu0 %v1299
    %v1301 = vand.u32 %v170, 4294901760
    %1302 = vmatpush.msra.mxu0 %v1301
    %v1303 = vand.u32 %v166, 4294901760
    %1304 = vmatpush.msra.mxu0 %v1303
    %v1305 = vand.u32 %v162, 4294901760
    %1306 = vmatpush.msra.mxu0 %v1305
    %v1307 = vand.u32 %v158, 4294901760
    %1308 = vmatpush.msra.mxu0 %v1307
    %v1309 = vand.u32 %v287, 4294901760
    %1310 = vmatmul.f32.gmra.mxu0 %v1309
    %v1311 = vpop.f32.mrf.mxu0
    %v1312 = vadd.f32 %v1275, %v1311
    %1313 = vdwg.mxu0
    %v1314 = vand.u32 %v282, 4294901760
    %1315 = vmatpush.msra.mxu0 %v1314
    %v1316 = vand.u32 %v278, 4294901760
    %1317 = vmatpush.msra.mxu0 %v1316
    %v1318 = vand.u32 %v274, 4294901760
    %1319 = vmatpush.msra.mxu0 %v1318
    %v1320 = vand.u32 %v270, 4294901760
    %1321 = vmatpush.msra.mxu0 %v1320
    %v1322 = vand.u32 %v266, 4294901760
    %1323 = vmatpush.msra.mxu0 %v1322
    %v1324 = vand.u32 %v262, 4294901760
    %1325 = vmatpush.msra.mxu0 %v1324
    %v1326 = vand.u32 %v258, 4294901760
    %1327 = vmatpush.msra.mxu0 %v1326
    %v1328 = vand.u32 %v254, 4294901760
    %1329 = vmatpush.msra.mxu0 %v1328
    %v1330 = vand.u32 %v250, 4294901760
    %1331 = vmatpush.msra.mxu0 %v1330
    %v1332 = vand.u32 %v246, 4294901760
    %1333 = vmatpush.msra.mxu0 %v1332
    %v1334 = vand.u32 %v242, 4294901760
    %1335 = vmatpush.msra.mxu0 %v1334
    %v1336 = vand.u32 %v238, 4294901760
    %1337 = vmatpush.msra.mxu0 %v1336
    %v1338 = vand.u32 %v234, 4294901760
    %1339 = vmatpush.msra.mxu0 %v1338
    %v1340 = vand.u32 %v230, 4294901760
    %1341 = vmatpush.msra.mxu0 %v1340
    %v1342 = vand.u32 %v226, 4294901760
    %1343 = vmatpush.msra.mxu0 %v1342
    %v1344 = vand.u32 %v222, 4294901760
    %1345 = vmatpush.msra.mxu0 %v1344
    %v1346 = vand.u32 %v288, 4294901760
    %v1347 = vsub.f32 %v288, %v1346
    %v1348 = vand.u32 %v1347, 4294901760
    %v1349 = vsub.f32 %v1347, %v1348
    %v1350 = vand.u32 %v1349, 4294901760
    %1351 = vmatmul.f32.gmra.mxu0 %v1350
    %v1352 = vpop.f32.mrf.mxu0
    %v1353 = vadd.f32 %v1312, %v1352
    %1354 = vdwg.mxu0
    %v1355 = vand.u32 %v282, 4294901760
    %v1356 = vsub.f32 %v282, %v1355
    %v1357 = vand.u32 %v1356, 4294901760
    %v1358 = vsub.f32 %v1356, %v1357
    %v1359 = vand.u32 %v1358, 4294901760
    %1360 = vmatpush.msra.mxu0 %v1359
    %v1361 = vand.u32 %v278, 4294901760
    %v1362 = vsub.f32 %v278, %v1361
    %v1363 = vand.u32 %v1362, 4294901760
    %v1364 = vsub.f32 %v1362, %v1363
    %v1365 = vand.u32 %v1364, 4294901760
    %1366 = vmatpush.msra.mxu0 %v1365
    %v1367 = vand.u32 %v274, 4294901760
    %v1368 = vsub.f32 %v274, %v1367
    %v1369 = vand.u32 %v1368, 4294901760
    %v1370 = vsub.f32 %v1368, %v1369
    %v1371 = vand.u32 %v1370, 4294901760
    %1372 = vmatpush.msra.mxu0 %v1371
    %v1373 = vand.u32 %v270, 4294901760
    %v1374 = vsub.f32 %v270, %v1373
    %v1375 = vand.u32 %v1374, 4294901760
    %v1376 = vsub.f32 %v1374, %v1375
    %v1377 = vand.u32 %v1376, 4294901760
    %1378 = vmatpush.msra.mxu0 %v1377
    %v1379 = vand.u32 %v266, 4294901760
    %v1380 = vsub.f32 %v266, %v1379
    %v1381 = vand.u32 %v1380, 4294901760
    %v1382 = vsub.f32 %v1380, %v1381
    %v1383 = vand.u32 %v1382, 4294901760
    %1384 = vmatpush.msra.mxu0 %v1383
    %v1385 = vand.u32 %v262, 4294901760
    %v1386 = vsub.f32 %v262, %v1385
    %v1387 = vand.u32 %v1386, 4294901760
    %v1388 = vsub.f32 %v1386, %v1387
    %v1389 = vand.u32 %v1388, 4294901760
    %1390 = vmatpush.msra.mxu0 %v1389
    %v1391 = vand.u32 %v258, 4294901760
    %v1392 = vsub.f32 %v258, %v1391
    %v1393 = vand.u32 %v1392, 4294901760
    %v1394 = vsub.f32 %v1392, %v1393
    %v1395 = vand.u32 %v1394, 4294901760
    %1396 = vmatpush.msra.mxu0 %v1395
    %v1397 = vand.u32 %v254, 4294901760
    %v1398 = vsub.f32 %v254, %v1397
    %v1399 = vand.u32 %v1398, 4294901760
    %v1400 = vsub.f32 %v1398, %v1399
    %v1401 = vand.u32 %v1400, 4294901760
    %1402 = vmatpush.msra.mxu0 %v1401
    %v1403 = vand.u32 %v250, 4294901760
    %v1404 = vsub.f32 %v250, %v1403
    %v1405 = vand.u32 %v1404, 4294901760
    %v1406 = vsub.f32 %v1404, %v1405
    %v1407 = vand.u32 %v1406, 4294901760
    %1408 = vmatpush.msra.mxu0 %v1407
    %v1409 = vand.u32 %v246, 4294901760
    %v1410 = vsub.f32 %v246, %v1409
    %v1411 = vand.u32 %v1410, 4294901760
    %v1412 = vsub.f32 %v1410, %v1411
    %v1413 = vand.u32 %v1412, 4294901760
    %1414 = vmatpush.msra.mxu0 %v1413
    %v1415 = vand.u32 %v242, 4294901760
    %v1416 = vsub.f32 %v242, %v1415
    %v1417 = vand.u32 %v1416, 4294901760
    %v1418 = vsub.f32 %v1416, %v1417
    %v1419 = vand.u32 %v1418, 4294901760
    %1420 = vmatpush.msra.mxu0 %v1419
    %v1421 = vand.u32 %v238, 4294901760
    %v1422 = vsub.f32 %v238, %v1421
    %v1423 = vand.u32 %v1422, 4294901760
    %v1424 = vsub.f32 %v1422, %v1423
    %v1425 = vand.u32 %v1424, 4294901760
    %1426 = vmatpush.msra.mxu0 %v1425
    %v1427 = vand.u32 %v234, 4294901760
    %v1428 = vsub.f32 %v234, %v1427
    %v1429 = vand.u32 %v1428, 4294901760
    %v1430 = vsub.f32 %v1428, %v1429
    %v1431 = vand.u32 %v1430, 4294901760
    %1432 = vmatpush.msra.mxu0 %v1431
    %v1433 = vand.u32 %v230, 4294901760
    %v1434 = vsub.f32 %v230, %v1433
    %v1435 = vand.u32 %v1434, 4294901760
    %v1436 = vsub.f32 %v1434, %v1435
    %v1437 = vand.u32 %v1436, 4294901760
    %1438 = vmatpush.msra.mxu0 %v1437
    %v1439 = vand.u32 %v226, 4294901760
    %v1440 = vsub.f32 %v226, %v1439
    %v1441 = vand.u32 %v1440, 4294901760
    %v1442 = vsub.f32 %v1440, %v1441
    %v1443 = vand.u32 %v1442, 4294901760
    %1444 = vmatpush.msra.mxu0 %v1443
    %v1445 = vand.u32 %v222, 4294901760
    %v1446 = vsub.f32 %v222, %v1445
    %v1447 = vand.u32 %v1446, 4294901760
    %v1448 = vsub.f32 %v1446, %v1447
    %v1449 = vand.u32 %v1448, 4294901760
    %1450 = vmatpush.msra.mxu0 %v1449
    %v1451 = vand.u32 %v288, 4294901760
    %1452 = vmatmul.f32.gmra.mxu0 %v1451
    %v1453 = vpop.f32.mrf.mxu0
    %v1454 = vadd.f32 %v1353, %v1453
    %1455 = vdwg.mxu0
    %v1456 = vand.u32 %v282, 4294901760
    %v1457 = vsub.f32 %v282, %v1456
    %1458 = vmatpush.msra.mxu0 %v1457
    %v1459 = vand.u32 %v278, 4294901760
    %v1460 = vsub.f32 %v278, %v1459
    %1461 = vmatpush.msra.mxu0 %v1460
    %v1462 = vand.u32 %v274, 4294901760
    %v1463 = vsub.f32 %v274, %v1462
    %1464 = vmatpush.msra.mxu0 %v1463
    %v1465 = vand.u32 %v270, 4294901760
    %v1466 = vsub.f32 %v270, %v1465
    %1467 = vmatpush.msra.mxu0 %v1466
    %v1468 = vand.u32 %v266, 4294901760
    %v1469 = vsub.f32 %v266, %v1468
    %1470 = vmatpush.msra.mxu0 %v1469
    %v1471 = vand.u32 %v262, 4294901760
    %v1472 = vsub.f32 %v262, %v1471
    %1473 = vmatpush.msra.mxu0 %v1472
    %v1474 = vand.u32 %v258, 4294901760
    %v1475 = vsub.f32 %v258, %v1474
    %1476 = vmatpush.msra.mxu0 %v1475
    %v1477 = vand.u32 %v254, 4294901760
    %v1478 = vsub.f32 %v254, %v1477
    %1479 = vmatpush.msra.mxu0 %v1478
    %v1480 = vand.u32 %v250, 4294901760
    %v1481 = vsub.f32 %v250, %v1480
    %1482 = vmatpush.msra.mxu0 %v1481
    %v1483 = vand.u32 %v246, 4294901760
    %v1484 = vsub.f32 %v246, %v1483
    %1485 = vmatpush.msra.mxu0 %v1484
    %v1486 = vand.u32 %v242, 4294901760
    %v1487 = vsub.f32 %v242, %v1486
    %1488 = vmatpush.msra.mxu0 %v1487
    %v1489 = vand.u32 %v238, 4294901760
    %v1490 = vsub.f32 %v238, %v1489
    %1491 = vmatpush.msra.mxu0 %v1490
    %v1492 = vand.u32 %v234, 4294901760
    %v1493 = vsub.f32 %v234, %v1492
    %1494 = vmatpush.msra.mxu0 %v1493
    %v1495 = vand.u32 %v230, 4294901760
    %v1496 = vsub.f32 %v230, %v1495
    %1497 = vmatpush.msra.mxu0 %v1496
    %v1498 = vand.u32 %v226, 4294901760
    %v1499 = vsub.f32 %v226, %v1498
    %1500 = vmatpush.msra.mxu0 %v1499
    %v1501 = vand.u32 %v222, 4294901760
    %v1502 = vsub.f32 %v222, %v1501
    %1503 = vmatpush.msra.mxu0 %v1502
    %v1504 = vand.u32 %v288, 4294901760
    %v1505 = vsub.f32 %v288, %v1504
    %1506 = vmatmul.f32.gmra.mxu0 %v1505
    %v1507 = vpop.f32.mrf.mxu0
    %v1508 = vadd.f32 %v1454, %v1507
    %1509 = vdwg.mxu0
    %v1510 = vand.u32 %v282, 4294901760
    %1511 = vmatpush.msra.mxu0 %v1510
    %v1512 = vand.u32 %v278, 4294901760
    %1513 = vmatpush.msra.mxu0 %v1512
    %v1514 = vand.u32 %v274, 4294901760
    %1515 = vmatpush.msra.mxu0 %v1514
    %v1516 = vand.u32 %v270, 4294901760
    %1517 = vmatpush.msra.mxu0 %v1516
    %v1518 = vand.u32 %v266, 4294901760
    %1519 = vmatpush.msra.mxu0 %v1518
    %v1520 = vand.u32 %v262, 4294901760
    %1521 = vmatpush.msra.mxu0 %v1520
    %v1522 = vand.u32 %v258, 4294901760
    %1523 = vmatpush.msra.mxu0 %v1522
    %v1524 = vand.u32 %v254, 4294901760
    %1525 = vmatpush.msra.mxu0 %v1524
    %v1526 = vand.u32 %v250, 4294901760
    %1527 = vmatpush.msra.mxu0 %v1526
    %v1528 = vand.u32 %v246, 4294901760
    %1529 = vmatpush.msra.mxu0 %v1528
    %v1530 = vand.u32 %v242, 4294901760
    %1531 = vmatpush.msra.mxu0 %v1530
    %v1532 = vand.u32 %v238, 4294901760
    %1533 = vmatpush.msra.mxu0 %v1532
    %v1534 = vand.u32 %v234, 4294901760
    %1535 = vmatpush.msra.mxu0 %v1534
    %v1536 = vand.u32 %v230, 4294901760
    %1537 = vmatpush.msra.mxu0 %v1536
    %v1538 = vand.u32 %v226, 4294901760
    %1539 = vmatpush.msra.mxu0 %v1538
    %v1540 = vand.u32 %v222, 4294901760
    %1541 = vmatpush.msra.mxu0 %v1540
    %v1542 = vand.u32 %v288, 4294901760
    %v1543 = vsub.f32 %v288, %v1542
    %v1544 = vand.u32 %v1543, 4294901760
    %1545 = vmatmul.f32.gmra.mxu0 %v1544
    %v1546 = vpop.f32.mrf.mxu0
    %v1547 = vadd.f32 %v1508, %v1546
    %1548 = vdwg.mxu0
    %v1549 = vand.u32 %v282, 4294901760
    %v1550 = vsub.f32 %v282, %v1549
    %v1551 = vand.u32 %v1550, 4294901760
    %1552 = vmatpush.msra.mxu0 %v1551
    %v1553 = vand.u32 %v278, 4294901760
    %v1554 = vsub.f32 %v278, %v1553
    %v1555 = vand.u32 %v1554, 4294901760
    %1556 = vmatpush.msra.mxu0 %v1555
    %v1557 = vand.u32 %v274, 4294901760
    %v1558 = vsub.f32 %v274, %v1557
    %v1559 = vand.u32 %v1558, 4294901760
    %1560 = vmatpush.msra.mxu0 %v1559
    %v1561 = vand.u32 %v270, 4294901760
    %v1562 = vsub.f32 %v270, %v1561
    %v1563 = vand.u32 %v1562, 4294901760
    %1564 = vmatpush.msra.mxu0 %v1563
    %v1565 = vand.u32 %v266, 4294901760
    %v1566 = vsub.f32 %v266, %v1565
    %v1567 = vand.u32 %v1566, 4294901760
    %1568 = vmatpush.msra.mxu0 %v1567
    %v1569 = vand.u32 %v262, 4294901760
    %v1570 = vsub.f32 %v262, %v1569
    %v1571 = vand.u32 %v1570, 4294901760
    %1572 = vmatpush.msra.mxu0 %v1571
    %v1573 = vand.u32 %v258, 4294901760
    %v1574 = vsub.f32 %v258, %v1573
    %v1575 = vand.u32 %v1574, 4294901760
    %1576 = vmatpush.msra.mxu0 %v1575
    %v1577 = vand.u32 %v254, 4294901760
    %v1578 = vsub.f32 %v254, %v1577
    %v1579 = vand.u32 %v1578, 4294901760
    %1580 = vmatpush.msra.mxu0 %v1579
    %v1581 = vand.u32 %v250, 4294901760
    %v1582 = vsub.f32 %v250, %v1581
    %v1583 = vand.u32 %v1582, 4294901760
    %1584 = vmatpush.msra.mxu0 %v1583
    %v1585 = vand.u32 %v246, 4294901760
    %v1586 = vsub.f32 %v246, %v1585
    %v1587 = vand.u32 %v1586, 4294901760
    %1588 = vmatpush.msra.mxu0 %v1587
    %v1589 = vand.u32 %v242, 4294901760
    %v1590 = vsub.f32 %v242, %v1589
    %v1591 = vand.u32 %v1590, 4294901760
    %1592 = vmatpush.msra.mxu0 %v1591
    %v1593 = vand.u32 %v238, 4294901760
    %v1594 = vsub.f32 %v238, %v1593
    %v1595 = vand.u32 %v1594, 4294901760
    %1596 = vmatpush.msra.mxu0 %v1595
    %v1597 = vand.u32 %v234, 4294901760
    %v1598 = vsub.f32 %v234, %v1597
    %v1599 = vand.u32 %v1598, 4294901760
    %1600 = vmatpush.msra.mxu0 %v1599
    %v1601 = vand.u32 %v230, 4294901760
    %v1602 = vsub.f32 %v230, %v1601
    %v1603 = vand.u32 %v1602, 4294901760
    %1604 = vmatpush.msra.mxu0 %v1603
    %v1605 = vand.u32 %v226, 4294901760
    %v1606 = vsub.f32 %v226, %v1605
    %v1607 = vand.u32 %v1606, 4294901760
    %1608 = vmatpush.msra.mxu0 %v1607
    %v1609 = vand.u32 %v222, 4294901760
    %v1610 = vsub.f32 %v222, %v1609
    %v1611 = vand.u32 %v1610, 4294901760
    %1612 = vmatpush.msra.mxu0 %v1611
    %v1613 = vand.u32 %v288, 4294901760
    %1614 = vmatmul.f32.gmra.mxu0 %v1613
    %v1615 = vpop.f32.mrf.mxu0
    %v1616 = vadd.f32 %v1547, %v1615
    %1617 = vdwg.mxu0
    %v1618 = vand.u32 %v282, 4294901760
    %1619 = vmatpush.msra.mxu0 %v1618
    %v1620 = vand.u32 %v278, 4294901760
    %1621 = vmatpush.msra.mxu0 %v1620
    %v1622 = vand.u32 %v274, 4294901760
    %1623 = vmatpush.msra.mxu0 %v1622
    %v1624 = vand.u32 %v270, 4294901760
    %1625 = vmatpush.msra.mxu0 %v1624
    %v1626 = vand.u32 %v266, 4294901760
    %1627 = vmatpush.msra.mxu0 %v1626
    %v1628 = vand.u32 %v262, 4294901760
    %1629 = vmatpush.msra.mxu0 %v1628
    %v1630 = vand.u32 %v258, 4294901760
    %1631 = vmatpush.msra.mxu0 %v1630
    %v1632 = vand.u32 %v254, 4294901760
    %1633 = vmatpush.msra.mxu0 %v1632
    %v1634 = vand.u32 %v250, 4294901760
    %1635 = vmatpush.msra.mxu0 %v1634
    %v1636 = vand.u32 %v246, 4294901760
    %1637 = vmatpush.msra.mxu0 %v1636
    %v1638 = vand.u32 %v242, 4294901760
    %1639 = vmatpush.msra.mxu0 %v1638
    %v1640 = vand.u32 %v238, 4294901760
    %1641 = vmatpush.msra.mxu0 %v1640
    %v1642 = vand.u32 %v234, 4294901760
    %1643 = vmatpush.msra.mxu0 %v1642
    %v1644 = vand.u32 %v230, 4294901760
    %1645 = vmatpush.msra.mxu0 %v1644
    %v1646 = vand.u32 %v226, 4294901760
    %1647 = vmatpush.msra.mxu0 %v1646
    %v1648 = vand.u32 %v222, 4294901760
    %1649 = vmatpush.msra.mxu0 %v1648
    %v1650 = vand.u32 %v288, 4294901760
    %1651 = vmatmul.f32.gmra.mxu0 %v1650
    %v1652 = vpop.f32.mrf.mxu0
    %v1653 = vadd.f32 %v1616, %v1652
    %1654 = vdwg.mxu0
    %v1655 = vand.u32 %v219, 4294901760
    %1656 = vmatpush.msra.mxu0 %v1655
    %v1657 = vand.u32 %v215, 4294901760
    %1658 = vmatpush.msra.mxu0 %v1657
    %v1659 = vand.u32 %v211, 4294901760
    %1660 = vmatpush.msra.mxu0 %v1659
    %v1661 = vand.u32 %v207, 4294901760
    %1662 = vmatpush.msra.mxu0 %v1661
    %v1663 = vand.u32 %v203, 4294901760
    %1664 = vmatpush.msra.mxu0 %v1663
    %v1665 = vand.u32 %v199, 4294901760
    %1666 = vmatpush.msra.mxu0 %v1665
    %v1667 = vand.u32 %v195, 4294901760
    %1668 = vmatpush.msra.mxu0 %v1667
    %v1669 = vand.u32 %v191, 4294901760
    %1670 = vmatpush.msra.mxu0 %v1669
    %v1671 = vand.u32 %v187, 4294901760
    %1672 = vmatpush.msra.mxu0 %v1671
    %v1673 = vand.u32 %v183, 4294901760
    %1674 = vmatpush.msra.mxu0 %v1673
    %v1675 = vand.u32 %v179, 4294901760
    %1676 = vmatpush.msra.mxu0 %v1675
    %v1677 = vand.u32 %v175, 4294901760
    %1678 = vmatpush.msra.mxu0 %v1677
    %v1679 = vand.u32 %v171, 4294901760
    %1680 = vmatpush.msra.mxu0 %v1679
    %v1681 = vand.u32 %v167, 4294901760
    %1682 = vmatpush.msra.mxu0 %v1681
    %v1683 = vand.u32 %v163, 4294901760
    %1684 = vmatpush.msra.mxu0 %v1683
    %v1685 = vand.u32 %v159, 4294901760
    %1686 = vmatpush.msra.mxu0 %v1685
    %v1687 = vand.u32 %v287, 4294901760
    %v1688 = vsub.f32 %v287, %v1687
    %v1689 = vand.u32 %v1688, 4294901760
    %v1690 = vsub.f32 %v1688, %v1689
    %v1691 = vand.u32 %v1690, 4294901760
    %1692 = vmatmul.f32.gmra.mxu0 %v1691
    %v1693 = vpop.f32.mrf.mxu0
    %v1694 = vadd.f32 0.0, %v1693
    %1695 = vdwg.mxu0
    %v1696 = vand.u32 %v219, 4294901760
    %v1697 = vsub.f32 %v219, %v1696
    %v1698 = vand.u32 %v1697, 4294901760
    %v1699 = vsub.f32 %v1697, %v1698
    %v1700 = vand.u32 %v1699, 4294901760
    %1701 = vmatpush.msra.mxu0 %v1700
    %v1702 = vand.u32 %v215, 4294901760
    %v1703 = vsub.f32 %v215, %v1702
    %v1704 = vand.u32 %v1703, 4294901760
    %v1705 = vsub.f32 %v1703, %v1704
    %v1706 = vand.u32 %v1705, 4294901760
    %1707 = vmatpush.msra.mxu0 %v1706
    %v1708 = vand.u32 %v211, 4294901760
    %v1709 = vsub.f32 %v211, %v1708
    %v1710 = vand.u32 %v1709, 4294901760
    %v1711 = vsub.f32 %v1709, %v1710
    %v1712 = vand.u32 %v1711, 4294901760
    %1713 = vmatpush.msra.mxu0 %v1712
    %v1714 = vand.u32 %v207, 4294901760
    %v1715 = vsub.f32 %v207, %v1714
    %v1716 = vand.u32 %v1715, 4294901760
    %v1717 = vsub.f32 %v1715, %v1716
    %v1718 = vand.u32 %v1717, 4294901760
    %1719 = vmatpush.msra.mxu0 %v1718
    %v1720 = vand.u32 %v203, 4294901760
    %v1721 = vsub.f32 %v203, %v1720
    %v1722 = vand.u32 %v1721, 4294901760
    %v1723 = vsub.f32 %v1721, %v1722
    %v1724 = vand.u32 %v1723, 4294901760
    %1725 = vmatpush.msra.mxu0 %v1724
    %v1726 = vand.u32 %v199, 4294901760
    %v1727 = vsub.f32 %v199, %v1726
    %v1728 = vand.u32 %v1727, 4294901760
    %v1729 = vsub.f32 %v1727, %v1728
    %v1730 = vand.u32 %v1729, 4294901760
    %1731 = vmatpush.msra.mxu0 %v1730
    %v1732 = vand.u32 %v195, 4294901760
    %v1733 = vsub.f32 %v195, %v1732
    %v1734 = vand.u32 %v1733, 4294901760
    %v1735 = vsub.f32 %v1733, %v1734
    %v1736 = vand.u32 %v1735, 4294901760
    %1737 = vmatpush.msra.mxu0 %v1736
    %v1738 = vand.u32 %v191, 4294901760
    %v1739 = vsub.f32 %v191, %v1738
    %v1740 = vand.u32 %v1739, 4294901760
    %v1741 = vsub.f32 %v1739, %v1740
    %v1742 = vand.u32 %v1741, 4294901760
    %1743 = vmatpush.msra.mxu0 %v1742
    %v1744 = vand.u32 %v187, 4294901760
    %v1745 = vsub.f32 %v187, %v1744
    %v1746 = vand.u32 %v1745, 4294901760
    %v1747 = vsub.f32 %v1745, %v1746
    %v1748 = vand.u32 %v1747, 4294901760
    %1749 = vmatpush.msra.mxu0 %v1748
    %v1750 = vand.u32 %v183, 4294901760
    %v1751 = vsub.f32 %v183, %v1750
    %v1752 = vand.u32 %v1751, 4294901760
    %v1753 = vsub.f32 %v1751, %v1752
    %v1754 = vand.u32 %v1753, 4294901760
    %1755 = vmatpush.msra.mxu0 %v1754
    %v1756 = vand.u32 %v179, 4294901760
    %v1757 = vsub.f32 %v179, %v1756
    %v1758 = vand.u32 %v1757, 4294901760
    %v1759 = vsub.f32 %v1757, %v1758
    %v1760 = vand.u32 %v1759, 4294901760
    %1761 = vmatpush.msra.mxu0 %v1760
    %v1762 = vand.u32 %v175, 4294901760
    %v1763 = vsub.f32 %v175, %v1762
    %v1764 = vand.u32 %v1763, 4294901760
    %v1765 = vsub.f32 %v1763, %v1764
    %v1766 = vand.u32 %v1765, 4294901760
    %1767 = vmatpush.msra.mxu0 %v1766
    %v1768 = vand.u32 %v171, 4294901760
    %v1769 = vsub.f32 %v171, %v1768
    %v1770 = vand.u32 %v1769, 4294901760
    %v1771 = vsub.f32 %v1769, %v1770
    %v1772 = vand.u32 %v1771, 4294901760
    %1773 = vmatpush.msra.mxu0 %v1772
    %v1774 = vand.u32 %v167, 4294901760
    %v1775 = vsub.f32 %v167, %v1774
    %v1776 = vand.u32 %v1775, 4294901760
    %v1777 = vsub.f32 %v1775, %v1776
    %v1778 = vand.u32 %v1777, 4294901760
    %1779 = vmatpush.msra.mxu0 %v1778
    %v1780 = vand.u32 %v163, 4294901760
    %v1781 = vsub.f32 %v163, %v1780
    %v1782 = vand.u32 %v1781, 4294901760
    %v1783 = vsub.f32 %v1781, %v1782
    %v1784 = vand.u32 %v1783, 4294901760
    %1785 = vmatpush.msra.mxu0 %v1784
    %v1786 = vand.u32 %v159, 4294901760
    %v1787 = vsub.f32 %v159, %v1786
    %v1788 = vand.u32 %v1787, 4294901760
    %v1789 = vsub.f32 %v1787, %v1788
    %v1790 = vand.u32 %v1789, 4294901760
    %1791 = vmatpush.msra.mxu0 %v1790
    %v1792 = vand.u32 %v287, 4294901760
    %1793 = vmatmul.f32.gmra.mxu0 %v1792
    %v1794 = vpop.f32.mrf.mxu0
    %v1795 = vadd.f32 %v1694, %v1794
    %1796 = vdwg.mxu0
    %v1797 = vand.u32 %v219, 4294901760
    %v1798 = vsub.f32 %v219, %v1797
    %1799 = vmatpush.msra.mxu0 %v1798
    %v1800 = vand.u32 %v215, 4294901760
    %v1801 = vsub.f32 %v215, %v1800
    %1802 = vmatpush.msra.mxu0 %v1801
    %v1803 = vand.u32 %v211, 4294901760
    %v1804 = vsub.f32 %v211, %v1803
    %1805 = vmatpush.msra.mxu0 %v1804
    %v1806 = vand.u32 %v207, 4294901760
    %v1807 = vsub.f32 %v207, %v1806
    %1808 = vmatpush.msra.mxu0 %v1807
    %v1809 = vand.u32 %v203, 4294901760
    %v1810 = vsub.f32 %v203, %v1809
    %1811 = vmatpush.msra.mxu0 %v1810
    %v1812 = vand.u32 %v199, 4294901760
    %v1813 = vsub.f32 %v199, %v1812
    %1814 = vmatpush.msra.mxu0 %v1813
    %v1815 = vand.u32 %v195, 4294901760
    %v1816 = vsub.f32 %v195, %v1815
    %1817 = vmatpush.msra.mxu0 %v1816
    %v1818 = vand.u32 %v191, 4294901760
    %v1819 = vsub.f32 %v191, %v1818
    %1820 = vmatpush.msra.mxu0 %v1819
    %v1821 = vand.u32 %v187, 4294901760
    %v1822 = vsub.f32 %v187, %v1821
    %1823 = vmatpush.msra.mxu0 %v1822
    %v1824 = vand.u32 %v183, 4294901760
    %v1825 = vsub.f32 %v183, %v1824
    %1826 = vmatpush.msra.mxu0 %v1825
    %v1827 = vand.u32 %v179, 4294901760
    %v1828 = vsub.f32 %v179, %v1827
    %1829 = vmatpush.msra.mxu0 %v1828
    %v1830 = vand.u32 %v175, 4294901760
    %v1831 = vsub.f32 %v175, %v1830
    %1832 = vmatpush.msra.mxu0 %v1831
    %v1833 = vand.u32 %v171, 4294901760
    %v1834 = vsub.f32 %v171, %v1833
    %1835 = vmatpush.msra.mxu0 %v1834
    %v1836 = vand.u32 %v167, 4294901760
    %v1837 = vsub.f32 %v167, %v1836
    %1838 = vmatpush.msra.mxu0 %v1837
    %v1839 = vand.u32 %v163, 4294901760
    %v1840 = vsub.f32 %v163, %v1839
    %1841 = vmatpush.msra.mxu0 %v1840
    %v1842 = vand.u32 %v159, 4294901760
    %v1843 = vsub.f32 %v159, %v1842
    %1844 = vmatpush.msra.mxu0 %v1843
    %v1845 = vand.u32 %v287, 4294901760
    %v1846 = vsub.f32 %v287, %v1845
    %1847 = vmatmul.f32.gmra.mxu0 %v1846
    %v1848 = vpop.f32.mrf.mxu0
    %v1849 = vadd.f32 %v1795, %v1848
    %1850 = vdwg.mxu0
    %v1851 = vand.u32 %v219, 4294901760
    %1852 = vmatpush.msra.mxu0 %v1851
    %v1853 = vand.u32 %v215, 4294901760
    %1854 = vmatpush.msra.mxu0 %v1853
    %v1855 = vand.u32 %v211, 4294901760
    %1856 = vmatpush.msra.mxu0 %v1855
    %v1857 = vand.u32 %v207, 4294901760
    %1858 = vmatpush.msra.mxu0 %v1857
    %v1859 = vand.u32 %v203, 4294901760
    %1860 = vmatpush.msra.mxu0 %v1859
    %v1861 = vand.u32 %v199, 4294901760
    %1862 = vmatpush.msra.mxu0 %v1861
    %v1863 = vand.u32 %v195, 4294901760
    %1864 = vmatpush.msra.mxu0 %v1863
    %v1865 = vand.u32 %v191, 4294901760
    %1866 = vmatpush.msra.mxu0 %v1865
    %v1867 = vand.u32 %v187, 4294901760
    %1868 = vmatpush.msra.mxu0 %v1867
    %v1869 = vand.u32 %v183, 4294901760
    %1870 = vmatpush.msra.mxu0 %v1869
    %v1871 = vand.u32 %v179, 4294901760
    %1872 = vmatpush.msra.mxu0 %v1871
    %v1873 = vand.u32 %v175, 4294901760
    %1874 = vmatpush.msra.mxu0 %v1873
    %v1875 = vand.u32 %v171, 4294901760
    %1876 = vmatpush.msra.mxu0 %v1875
    %v1877 = vand.u32 %v167, 4294901760
    %1878 = vmatpush.msra.mxu0 %v1877
    %v1879 = vand.u32 %v163, 4294901760
    %1880 = vmatpush.msra.mxu0 %v1879
    %v1881 = vand.u32 %v159, 4294901760
    %1882 = vmatpush.msra.mxu0 %v1881
    %v1883 = vand.u32 %v287, 4294901760
    %v1884 = vsub.f32 %v287, %v1883
    %v1885 = vand.u32 %v1884, 4294901760
    %1886 = vmatmul.f32.gmra.mxu0 %v1885
    %v1887 = vpop.f32.mrf.mxu0
    %v1888 = vadd.f32 %v1849, %v1887
    %1889 = vdwg.mxu0
    %v1890 = vand.u32 %v219, 4294901760
    %v1891 = vsub.f32 %v219, %v1890
    %v1892 = vand.u32 %v1891, 4294901760
    %1893 = vmatpush.msra.mxu0 %v1892
    %v1894 = vand.u32 %v215, 4294901760
    %v1895 = vsub.f32 %v215, %v1894
    %v1896 = vand.u32 %v1895, 4294901760
    %1897 = vmatpush.msra.mxu0 %v1896
    %v1898 = vand.u32 %v211, 4294901760
    %v1899 = vsub.f32 %v211, %v1898
    %v1900 = vand.u32 %v1899, 4294901760
    %1901 = vmatpush.msra.mxu0 %v1900
    %v1902 = vand.u32 %v207, 4294901760
    %v1903 = vsub.f32 %v207, %v1902
    %v1904 = vand.u32 %v1903, 4294901760
    %1905 = vmatpush.msra.mxu0 %v1904
    %v1906 = vand.u32 %v203, 4294901760
    %v1907 = vsub.f32 %v203, %v1906
    %v1908 = vand.u32 %v1907, 4294901760
    %1909 = vmatpush.msra.mxu0 %v1908
    %v1910 = vand.u32 %v199, 4294901760
    %v1911 = vsub.f32 %v199, %v1910
    %v1912 = vand.u32 %v1911, 4294901760
    %1913 = vmatpush.msra.mxu0 %v1912
    %v1914 = vand.u32 %v195, 4294901760
    %v1915 = vsub.f32 %v195, %v1914
    %v1916 = vand.u32 %v1915, 4294901760
    %1917 = vmatpush.msra.mxu0 %v1916
    %v1918 = vand.u32 %v191, 4294901760
    %v1919 = vsub.f32 %v191, %v1918
    %v1920 = vand.u32 %v1919, 4294901760
    %1921 = vmatpush.msra.mxu0 %v1920
    %v1922 = vand.u32 %v187, 4294901760
    %v1923 = vsub.f32 %v187, %v1922
    %v1924 = vand.u32 %v1923, 4294901760
    %1925 = vmatpush.msra.mxu0 %v1924
    %v1926 = vand.u32 %v183, 4294901760
    %v1927 = vsub.f32 %v183, %v1926
    %v1928 = vand.u32 %v1927, 4294901760
    %1929 = vmatpush.msra.mxu0 %v1928
    %v1930 = vand.u32 %v179, 4294901760
    %v1931 = vsub.f32 %v179, %v1930
    %v1932 = vand.u32 %v1931, 4294901760
    %1933 = vmatpush.msra.mxu0 %v1932
    %v1934 = vand.u32 %v175, 4294901760
    %v1935 = vsub.f32 %v175, %v1934
    %v1936 = vand.u32 %v1935, 4294901760
    %1937 = vmatpush.msra.mxu0 %v1936
    %v1938 = vand.u32 %v171, 4294901760
    %v1939 = vsub.f32 %v171, %v1938
    %v1940 = vand.u32 %v1939, 4294901760
    %1941 = vmatpush.msra.mxu0 %v1940
    %v1942 = vand.u32 %v167, 4294901760
    %v1943 = vsub.f32 %v167, %v1942
    %v1944 = vand.u32 %v1943, 4294901760
    %1945 = vmatpush.msra.mxu0 %v1944
    %v1946 = vand.u32 %v163, 4294901760
    %v1947 = vsub.f32 %v163, %v1946
    %v1948 = vand.u32 %v1947, 4294901760
    %1949 = vmatpush.msra.mxu0 %v1948
    %v1950 = vand.u32 %v159, 4294901760
    %v1951 = vsub.f32 %v159, %v1950
    %v1952 = vand.u32 %v1951, 4294901760
    %1953 = vmatpush.msra.mxu0 %v1952
    %v1954 = vand.u32 %v287, 4294901760
    %1955 = vmatmul.f32.gmra.mxu0 %v1954
    %v1956 = vpop.f32.mrf.mxu0
    %v1957 = vadd.f32 %v1888, %v1956
    %1958 = vdwg.mxu0
    %v1959 = vand.u32 %v219, 4294901760
    %1960 = vmatpush.msra.mxu0 %v1959
    %v1961 = vand.u32 %v215, 4294901760
    %1962 = vmatpush.msra.mxu0 %v1961
    %v1963 = vand.u32 %v211, 4294901760
    %1964 = vmatpush.msra.mxu0 %v1963
    %v1965 = vand.u32 %v207, 4294901760
    %1966 = vmatpush.msra.mxu0 %v1965
    %v1967 = vand.u32 %v203, 4294901760
    %1968 = vmatpush.msra.mxu0 %v1967
    %v1969 = vand.u32 %v199, 4294901760
    %1970 = vmatpush.msra.mxu0 %v1969
    %v1971 = vand.u32 %v195, 4294901760
    %1972 = vmatpush.msra.mxu0 %v1971
    %v1973 = vand.u32 %v191, 4294901760
    %1974 = vmatpush.msra.mxu0 %v1973
    %v1975 = vand.u32 %v187, 4294901760
    %1976 = vmatpush.msra.mxu0 %v1975
    %v1977 = vand.u32 %v183, 4294901760
    %1978 = vmatpush.msra.mxu0 %v1977
    %v1979 = vand.u32 %v179, 4294901760
    %1980 = vmatpush.msra.mxu0 %v1979
    %v1981 = vand.u32 %v175, 4294901760
    %1982 = vmatpush.msra.mxu0 %v1981
    %v1983 = vand.u32 %v171, 4294901760
    %1984 = vmatpush.msra.mxu0 %v1983
    %v1985 = vand.u32 %v167, 4294901760
    %1986 = vmatpush.msra.mxu0 %v1985
    %v1987 = vand.u32 %v163, 4294901760
    %1988 = vmatpush.msra.mxu0 %v1987
    %v1989 = vand.u32 %v159, 4294901760
    %1990 = vmatpush.msra.mxu0 %v1989
    %v1991 = vand.u32 %v287, 4294901760
    %1992 = vmatmul.f32.gmra.mxu0 %v1991
    %v1993 = vpop.f32.mrf.mxu0
    %v1994 = vadd.f32 %v1957, %v1993
    %1995 = vdwg.mxu0
    %v1996 = vand.u32 %v283, 4294901760
    %1997 = vmatpush.msra.mxu0 %v1996
    %v1998 = vand.u32 %v279, 4294901760
    %1999 = vmatpush.msra.mxu0 %v1998
    %v2000 = vand.u32 %v275, 4294901760
    %2001 = vmatpush.msra.mxu0 %v2000
    %v2002 = vand.u32 %v271, 4294901760
    %2003 = vmatpush.msra.mxu0 %v2002
    %v2004 = vand.u32 %v267, 4294901760
    %2005 = vmatpush.msra.mxu0 %v2004
    %v2006 = vand.u32 %v263, 4294901760
    %2007 = vmatpush.msra.mxu0 %v2006
    %v2008 = vand.u32 %v259, 4294901760
    %2009 = vmatpush.msra.mxu0 %v2008
    %v2010 = vand.u32 %v255, 4294901760
    %2011 = vmatpush.msra.mxu0 %v2010
    %v2012 = vand.u32 %v251, 4294901760
    %2013 = vmatpush.msra.mxu0 %v2012
    %v2014 = vand.u32 %v247, 4294901760
    %2015 = vmatpush.msra.mxu0 %v2014
    %v2016 = vand.u32 %v243, 4294901760
    %2017 = vmatpush.msra.mxu0 %v2016
    %v2018 = vand.u32 %v239, 4294901760
    %2019 = vmatpush.msra.mxu0 %v2018
    %v2020 = vand.u32 %v235, 4294901760
    %2021 = vmatpush.msra.mxu0 %v2020
    %v2022 = vand.u32 %v231, 4294901760
    %2023 = vmatpush.msra.mxu0 %v2022
    %v2024 = vand.u32 %v227, 4294901760
    %2025 = vmatpush.msra.mxu0 %v2024
    %v2026 = vand.u32 %v223, 4294901760
    %2027 = vmatpush.msra.mxu0 %v2026
    %v2028 = vand.u32 %v288, 4294901760
    %v2029 = vsub.f32 %v288, %v2028
    %v2030 = vand.u32 %v2029, 4294901760
    %v2031 = vsub.f32 %v2029, %v2030
    %v2032 = vand.u32 %v2031, 4294901760
    %2033 = vmatmul.f32.gmra.mxu0 %v2032
    %v2034 = vpop.f32.mrf.mxu0
    %v2035 = vadd.f32 %v1994, %v2034
    %2036 = vdwg.mxu0
    %v2037 = vand.u32 %v283, 4294901760
    %v2038 = vsub.f32 %v283, %v2037
    %v2039 = vand.u32 %v2038, 4294901760
    %v2040 = vsub.f32 %v2038, %v2039
    %v2041 = vand.u32 %v2040, 4294901760
    %2042 = vmatpush.msra.mxu0 %v2041
    %v2043 = vand.u32 %v279, 4294901760
    %v2044 = vsub.f32 %v279, %v2043
    %v2045 = vand.u32 %v2044, 4294901760
    %v2046 = vsub.f32 %v2044, %v2045
    %v2047 = vand.u32 %v2046, 4294901760
    %2048 = vmatpush.msra.mxu0 %v2047
    %v2049 = vand.u32 %v275, 4294901760
    %v2050 = vsub.f32 %v275, %v2049
    %v2051 = vand.u32 %v2050, 4294901760
    %v2052 = vsub.f32 %v2050, %v2051
    %v2053 = vand.u32 %v2052, 4294901760
    %2054 = vmatpush.msra.mxu0 %v2053
    %v2055 = vand.u32 %v271, 4294901760
    %v2056 = vsub.f32 %v271, %v2055
    %v2057 = vand.u32 %v2056, 4294901760
    %v2058 = vsub.f32 %v2056, %v2057
    %v2059 = vand.u32 %v2058, 4294901760
    %2060 = vmatpush.msra.mxu0 %v2059
    %v2061 = vand.u32 %v267, 4294901760
    %v2062 = vsub.f32 %v267, %v2061
    %v2063 = vand.u32 %v2062, 4294901760
    %v2064 = vsub.f32 %v2062, %v2063
    %v2065 = vand.u32 %v2064, 4294901760
    %2066 = vmatpush.msra.mxu0 %v2065
    %v2067 = vand.u32 %v263, 4294901760
    %v2068 = vsub.f32 %v263, %v2067
    %v2069 = vand.u32 %v2068, 4294901760
    %v2070 = vsub.f32 %v2068, %v2069
    %v2071 = vand.u32 %v2070, 4294901760
    %2072 = vmatpush.msra.mxu0 %v2071
    %v2073 = vand.u32 %v259, 4294901760
    %v2074 = vsub.f32 %v259, %v2073
    %v2075 = vand.u32 %v2074, 4294901760
    %v2076 = vsub.f32 %v2074, %v2075
    %v2077 = vand.u32 %v2076, 4294901760
    %2078 = vmatpush.msra.mxu0 %v2077
    %v2079 = vand.u32 %v255, 4294901760
    %v2080 = vsub.f32 %v255, %v2079
    %v2081 = vand.u32 %v2080, 4294901760
    %v2082 = vsub.f32 %v2080, %v2081
    %v2083 = vand.u32 %v2082, 4294901760
    %2084 = vmatpush.msra.mxu0 %v2083
    %v2085 = vand.u32 %v251, 4294901760
    %v2086 = vsub.f32 %v251, %v2085
    %v2087 = vand.u32 %v2086, 4294901760
    %v2088 = vsub.f32 %v2086, %v2087
    %v2089 = vand.u32 %v2088, 4294901760
    %2090 = vmatpush.msra.mxu0 %v2089
    %v2091 = vand.u32 %v247, 4294901760
    %v2092 = vsub.f32 %v247, %v2091
    %v2093 = vand.u32 %v2092, 4294901760
    %v2094 = vsub.f32 %v2092, %v2093
    %v2095 = vand.u32 %v2094, 4294901760
    %2096 = vmatpush.msra.mxu0 %v2095
    %v2097 = vand.u32 %v243, 4294901760
    %v2098 = vsub.f32 %v243, %v2097
    %v2099 = vand.u32 %v2098, 4294901760
    %v2100 = vsub.f32 %v2098, %v2099
    %v2101 = vand.u32 %v2100, 4294901760
    %2102 = vmatpush.msra.mxu0 %v2101
    %v2103 = vand.u32 %v239, 4294901760
    %v2104 = vsub.f32 %v239, %v2103
    %v2105 = vand.u32 %v2104, 4294901760
    %v2106 = vsub.f32 %v2104, %v2105
    %v2107 = vand.u32 %v2106, 4294901760
    %2108 = vmatpush.msra.mxu0 %v2107
    %v2109 = vand.u32 %v235, 4294901760
    %v2110 = vsub.f32 %v235, %v2109
    %v2111 = vand.u32 %v2110, 4294901760
    %v2112 = vsub.f32 %v2110, %v2111
    %v2113 = vand.u32 %v2112, 4294901760
    %2114 = vmatpush.msra.mxu0 %v2113
    %v2115 = vand.u32 %v231, 4294901760
    %v2116 = vsub.f32 %v231, %v2115
    %v2117 = vand.u32 %v2116, 4294901760
    %v2118 = vsub.f32 %v2116, %v2117
    %v2119 = vand.u32 %v2118, 4294901760
    %2120 = vmatpush.msra.mxu0 %v2119
    %v2121 = vand.u32 %v227, 4294901760
    %v2122 = vsub.f32 %v227, %v2121
    %v2123 = vand.u32 %v2122, 4294901760
    %v2124 = vsub.f32 %v2122, %v2123
    %v2125 = vand.u32 %v2124, 4294901760
    %2126 = vmatpush.msra.mxu0 %v2125
    %v2127 = vand.u32 %v223, 4294901760
    %v2128 = vsub.f32 %v223, %v2127
    %v2129 = vand.u32 %v2128, 4294901760
    %v2130 = vsub.f32 %v2128, %v2129
    %v2131 = vand.u32 %v2130, 4294901760
    %2132 = vmatpush.msra.mxu0 %v2131
    %v2133 = vand.u32 %v288, 4294901760
    %2134 = vmatmul.f32.gmra.mxu0 %v2133
    %v2135 = vpop.f32.mrf.mxu0
    %v2136 = vadd.f32 %v2035, %v2135
    %2137 = vdwg.mxu0
    %v2138 = vand.u32 %v283, 4294901760
    %v2139 = vsub.f32 %v283, %v2138
    %2140 = vmatpush.msra.mxu0 %v2139
    %v2141 = vand.u32 %v279, 4294901760
    %v2142 = vsub.f32 %v279, %v2141
    %2143 = vmatpush.msra.mxu0 %v2142
    %v2144 = vand.u32 %v275, 4294901760
    %v2145 = vsub.f32 %v275, %v2144
    %2146 = vmatpush.msra.mxu0 %v2145
    %v2147 = vand.u32 %v271, 4294901760
    %v2148 = vsub.f32 %v271, %v2147
    %2149 = vmatpush.msra.mxu0 %v2148
    %v2150 = vand.u32 %v267, 4294901760
    %v2151 = vsub.f32 %v267, %v2150
    %2152 = vmatpush.msra.mxu0 %v2151
    %v2153 = vand.u32 %v263, 4294901760
    %v2154 = vsub.f32 %v263, %v2153
    %2155 = vmatpush.msra.mxu0 %v2154
    %v2156 = vand.u32 %v259, 4294901760
    %v2157 = vsub.f32 %v259, %v2156
    %2158 = vmatpush.msra.mxu0 %v2157
    %v2159 = vand.u32 %v255, 4294901760
    %v2160 = vsub.f32 %v255, %v2159
    %2161 = vmatpush.msra.mxu0 %v2160
    %v2162 = vand.u32 %v251, 4294901760
    %v2163 = vsub.f32 %v251, %v2162
    %2164 = vmatpush.msra.mxu0 %v2163
    %v2165 = vand.u32 %v247, 4294901760
    %v2166 = vsub.f32 %v247, %v2165
    %2167 = vmatpush.msra.mxu0 %v2166
    %v2168 = vand.u32 %v243, 4294901760
    %v2169 = vsub.f32 %v243, %v2168
    %2170 = vmatpush.msra.mxu0 %v2169
    %v2171 = vand.u32 %v239, 4294901760
    %v2172 = vsub.f32 %v239, %v2171
    %2173 = vmatpush.msra.mxu0 %v2172
    %v2174 = vand.u32 %v235, 4294901760
    %v2175 = vsub.f32 %v235, %v2174
    %2176 = vmatpush.msra.mxu0 %v2175
    %v2177 = vand.u32 %v231, 4294901760
    %v2178 = vsub.f32 %v231, %v2177
    %2179 = vmatpush.msra.mxu0 %v2178
    %v2180 = vand.u32 %v227, 4294901760
    %v2181 = vsub.f32 %v227, %v2180
    %2182 = vmatpush.msra.mxu0 %v2181
    %v2183 = vand.u32 %v223, 4294901760
    %v2184 = vsub.f32 %v223, %v2183
    %2185 = vmatpush.msra.mxu0 %v2184
    %v2186 = vand.u32 %v288, 4294901760
    %v2187 = vsub.f32 %v288, %v2186
    %2188 = vmatmul.f32.gmra.mxu0 %v2187
    %v2189 = vpop.f32.mrf.mxu0
    %v2190 = vadd.f32 %v2136, %v2189
    %2191 = vdwg.mxu0
    %v2192 = vand.u32 %v283, 4294901760
    %2193 = vmatpush.msra.mxu0 %v2192
    %v2194 = vand.u32 %v279, 4294901760
    %2195 = vmatpush.msra.mxu0 %v2194
    %v2196 = vand.u32 %v275, 4294901760
    %2197 = vmatpush.msra.mxu0 %v2196
    %v2198 = vand.u32 %v271, 4294901760
    %2199 = vmatpush.msra.mxu0 %v2198
    %v2200 = vand.u32 %v267, 4294901760
    %2201 = vmatpush.msra.mxu0 %v2200
    %v2202 = vand.u32 %v263, 4294901760
    %2203 = vmatpush.msra.mxu0 %v2202
    %v2204 = vand.u32 %v259, 4294901760
    %2205 = vmatpush.msra.mxu0 %v2204
    %v2206 = vand.u32 %v255, 4294901760
    %2207 = vmatpush.msra.mxu0 %v2206
    %v2208 = vand.u32 %v251, 4294901760
    %2209 = vmatpush.msra.mxu0 %v2208
    %v2210 = vand.u32 %v247, 4294901760
    %2211 = vmatpush.msra.mxu0 %v2210
    %v2212 = vand.u32 %v243, 4294901760
    %2213 = vmatpush.msra.mxu0 %v2212
    %v2214 = vand.u32 %v239, 4294901760
    %2215 = vmatpush.msra.mxu0 %v2214
    %v2216 = vand.u32 %v235, 4294901760
    %2217 = vmatpush.msra.mxu0 %v2216
    %v2218 = vand.u32 %v231, 4294901760
    %2219 = vmatpush.msra.mxu0 %v2218
    %v2220 = vand.u32 %v227, 4294901760
    %2221 = vmatpush.msra.mxu0 %v2220
    %v2222 = vand.u32 %v223, 4294901760
    %2223 = vmatpush.msra.mxu0 %v2222
    %v2224 = vand.u32 %v288, 4294901760
    %v2225 = vsub.f32 %v288, %v2224
    %v2226 = vand.u32 %v2225, 4294901760
    %2227 = vmatmul.f32.gmra.mxu0 %v2226
    %v2228 = vpop.f32.mrf.mxu0
    %v2229 = vadd.f32 %v2190, %v2228
    %2230 = vdwg.mxu0
    %v2231 = vand.u32 %v283, 4294901760
    %v2232 = vsub.f32 %v283, %v2231
    %v2233 = vand.u32 %v2232, 4294901760
    %2234 = vmatpush.msra.mxu0 %v2233
    %v2235 = vand.u32 %v279, 4294901760
    %v2236 = vsub.f32 %v279, %v2235
    %v2237 = vand.u32 %v2236, 4294901760
    %2238 = vmatpush.msra.mxu0 %v2237
    %v2239 = vand.u32 %v275, 4294901760
    %v2240 = vsub.f32 %v275, %v2239
    %v2241 = vand.u32 %v2240, 4294901760
    %2242 = vmatpush.msra.mxu0 %v2241
    %v2243 = vand.u32 %v271, 4294901760
    %v2244 = vsub.f32 %v271, %v2243
    %v2245 = vand.u32 %v2244, 4294901760
    %2246 = vmatpush.msra.mxu0 %v2245
    %v2247 = vand.u32 %v267, 4294901760
    %v2248 = vsub.f32 %v267, %v2247
    %v2249 = vand.u32 %v2248, 4294901760
    %2250 = vmatpush.msra.mxu0 %v2249
    %v2251 = vand.u32 %v263, 4294901760
    %v2252 = vsub.f32 %v263, %v2251
    %v2253 = vand.u32 %v2252, 4294901760
    %2254 = vmatpush.msra.mxu0 %v2253
    %v2255 = vand.u32 %v259, 4294901760
    %v2256 = vsub.f32 %v259, %v2255
    %v2257 = vand.u32 %v2256, 4294901760
    %2258 = vmatpush.msra.mxu0 %v2257
    %v2259 = vand.u32 %v255, 4294901760
    %v2260 = vsub.f32 %v255, %v2259
    %v2261 = vand.u32 %v2260, 4294901760
    %2262 = vmatpush.msra.mxu0 %v2261
    %v2263 = vand.u32 %v251, 4294901760
    %v2264 = vsub.f32 %v251, %v2263
    %v2265 = vand.u32 %v2264, 4294901760
    %2266 = vmatpush.msra.mxu0 %v2265
    %v2267 = vand.u32 %v247, 4294901760
    %v2268 = vsub.f32 %v247, %v2267
    %v2269 = vand.u32 %v2268, 4294901760
    %2270 = vmatpush.msra.mxu0 %v2269
    %v2271 = vand.u32 %v243, 4294901760
    %v2272 = vsub.f32 %v243, %v2271
    %v2273 = vand.u32 %v2272, 4294901760
    %2274 = vmatpush.msra.mxu0 %v2273
    %v2275 = vand.u32 %v239, 4294901760
    %v2276 = vsub.f32 %v239, %v2275
    %v2277 = vand.u32 %v2276, 4294901760
    %2278 = vmatpush.msra.mxu0 %v2277
    %v2279 = vand.u32 %v235, 4294901760
    %v2280 = vsub.f32 %v235, %v2279
    %v2281 = vand.u32 %v2280, 4294901760
    %2282 = vmatpush.msra.mxu0 %v2281
    %v2283 = vand.u32 %v231, 4294901760
    %v2284 = vsub.f32 %v231, %v2283
    %v2285 = vand.u32 %v2284, 4294901760
    %2286 = vmatpush.msra.mxu0 %v2285
    %v2287 = vand.u32 %v227, 4294901760
    %v2288 = vsub.f32 %v227, %v2287
    %v2289 = vand.u32 %v2288, 4294901760
    %2290 = vmatpush.msra.mxu0 %v2289
    %v2291 = vand.u32 %v223, 4294901760
    %v2292 = vsub.f32 %v223, %v2291
    %v2293 = vand.u32 %v2292, 4294901760
    %2294 = vmatpush.msra.mxu0 %v2293
    %v2295 = vand.u32 %v288, 4294901760
    %2296 = vmatmul.f32.gmra.mxu0 %v2295
    %v2297 = vpop.f32.mrf.mxu0
    %v2298 = vadd.f32 %v2229, %v2297
    %2299 = vdwg.mxu0
    %v2300 = vand.u32 %v283, 4294901760
    %2301 = vmatpush.msra.mxu0 %v2300
    %v2302 = vand.u32 %v279, 4294901760
    %2303 = vmatpush.msra.mxu0 %v2302
    %v2304 = vand.u32 %v275, 4294901760
    %2305 = vmatpush.msra.mxu0 %v2304
    %v2306 = vand.u32 %v271, 4294901760
    %2307 = vmatpush.msra.mxu0 %v2306
    %v2308 = vand.u32 %v267, 4294901760
    %2309 = vmatpush.msra.mxu0 %v2308
    %v2310 = vand.u32 %v263, 4294901760
    %2311 = vmatpush.msra.mxu0 %v2310
    %v2312 = vand.u32 %v259, 4294901760
    %2313 = vmatpush.msra.mxu0 %v2312
    %v2314 = vand.u32 %v255, 4294901760
    %2315 = vmatpush.msra.mxu0 %v2314
    %v2316 = vand.u32 %v251, 4294901760
    %2317 = vmatpush.msra.mxu0 %v2316
    %v2318 = vand.u32 %v247, 4294901760
    %2319 = vmatpush.msra.mxu0 %v2318
    %v2320 = vand.u32 %v243, 4294901760
    %2321 = vmatpush.msra.mxu0 %v2320
    %v2322 = vand.u32 %v239, 4294901760
    %2323 = vmatpush.msra.mxu0 %v2322
    %v2324 = vand.u32 %v235, 4294901760
    %2325 = vmatpush.msra.mxu0 %v2324
    %v2326 = vand.u32 %v231, 4294901760
    %2327 = vmatpush.msra.mxu0 %v2326
    %v2328 = vand.u32 %v227, 4294901760
    %2329 = vmatpush.msra.mxu0 %v2328
    %v2330 = vand.u32 %v223, 4294901760
    %2331 = vmatpush.msra.mxu0 %v2330
    %v2332 = vand.u32 %v288, 4294901760
    %2333 = vmatmul.f32.gmra.mxu0 %v2332
    %v2334 = vpop.f32.mrf.mxu0
    %v2335 = vadd.f32 %v2298, %v2334
    %2336 = vdwg.mxu0
    %v2337 = vand.u32 %v220, 4294901760
    %2338 = vmatpush.msra.mxu0 %v2337
    %v2339 = vand.u32 %v216, 4294901760
    %2340 = vmatpush.msra.mxu0 %v2339
    %v2341 = vand.u32 %v212, 4294901760
    %2342 = vmatpush.msra.mxu0 %v2341
    %v2343 = vand.u32 %v208, 4294901760
    %2344 = vmatpush.msra.mxu0 %v2343
    %v2345 = vand.u32 %v204, 4294901760
    %2346 = vmatpush.msra.mxu0 %v2345
    %v2347 = vand.u32 %v200, 4294901760
    %2348 = vmatpush.msra.mxu0 %v2347
    %v2349 = vand.u32 %v196, 4294901760
    %2350 = vmatpush.msra.mxu0 %v2349
    %v2351 = vand.u32 %v192, 4294901760
    %2352 = vmatpush.msra.mxu0 %v2351
    %v2353 = vand.u32 %v188, 4294901760
    %2354 = vmatpush.msra.mxu0 %v2353
    %v2355 = vand.u32 %v184, 4294901760
    %2356 = vmatpush.msra.mxu0 %v2355
    %v2357 = vand.u32 %v180, 4294901760
    %2358 = vmatpush.msra.mxu0 %v2357
    %v2359 = vand.u32 %v176, 4294901760
    %2360 = vmatpush.msra.mxu0 %v2359
    %v2361 = vand.u32 %v172, 4294901760
    %2362 = vmatpush.msra.mxu0 %v2361
    %v2363 = vand.u32 %v168, 4294901760
    %2364 = vmatpush.msra.mxu0 %v2363
    %v2365 = vand.u32 %v164, 4294901760
    %2366 = vmatpush.msra.mxu0 %v2365
    %v2367 = vand.u32 %v160, 4294901760
    %2368 = vmatpush.msra.mxu0 %v2367
    %v2369 = vand.u32 %v287, 4294901760
    %v2370 = vsub.f32 %v287, %v2369
    %v2371 = vand.u32 %v2370, 4294901760
    %v2372 = vsub.f32 %v2370, %v2371
    %v2373 = vand.u32 %v2372, 4294901760
    %2374 = vmatmul.f32.gmra.mxu0 %v2373
    %v2375 = vpop.f32.mrf.mxu0
    %v2376 = vadd.f32 0.0, %v2375
    %2377 = vdwg.mxu0
    %v2378 = vand.u32 %v220, 4294901760
    %v2379 = vsub.f32 %v220, %v2378
    %v2380 = vand.u32 %v2379, 4294901760
    %v2381 = vsub.f32 %v2379, %v2380
    %v2382 = vand.u32 %v2381, 4294901760
    %2383 = vmatpush.msra.mxu0 %v2382
    %v2384 = vand.u32 %v216, 4294901760
    %v2385 = vsub.f32 %v216, %v2384
    %v2386 = vand.u32 %v2385, 4294901760
    %v2387 = vsub.f32 %v2385, %v2386
    %v2388 = vand.u32 %v2387, 4294901760
    %2389 = vmatpush.msra.mxu0 %v2388
    %v2390 = vand.u32 %v212, 4294901760
    %v2391 = vsub.f32 %v212, %v2390
    %v2392 = vand.u32 %v2391, 4294901760
    %v2393 = vsub.f32 %v2391, %v2392
    %v2394 = vand.u32 %v2393, 4294901760
    %2395 = vmatpush.msra.mxu0 %v2394
    %v2396 = vand.u32 %v208, 4294901760
    %v2397 = vsub.f32 %v208, %v2396
    %v2398 = vand.u32 %v2397, 4294901760
    %v2399 = vsub.f32 %v2397, %v2398
    %v2400 = vand.u32 %v2399, 4294901760
    %2401 = vmatpush.msra.mxu0 %v2400
    %v2402 = vand.u32 %v204, 4294901760
    %v2403 = vsub.f32 %v204, %v2402
    %v2404 = vand.u32 %v2403, 4294901760
    %v2405 = vsub.f32 %v2403, %v2404
    %v2406 = vand.u32 %v2405, 4294901760
    %2407 = vmatpush.msra.mxu0 %v2406
    %v2408 = vand.u32 %v200, 4294901760
    %v2409 = vsub.f32 %v200, %v2408
    %v2410 = vand.u32 %v2409, 4294901760
    %v2411 = vsub.f32 %v2409, %v2410
    %v2412 = vand.u32 %v2411, 4294901760
    %2413 = vmatpush.msra.mxu0 %v2412
    %v2414 = vand.u32 %v196, 4294901760
    %v2415 = vsub.f32 %v196, %v2414
    %v2416 = vand.u32 %v2415, 4294901760
    %v2417 = vsub.f32 %v2415, %v2416
    %v2418 = vand.u32 %v2417, 4294901760
    %2419 = vmatpush.msra.mxu0 %v2418
    %v2420 = vand.u32 %v192, 4294901760
    %v2421 = vsub.f32 %v192, %v2420
    %v2422 = vand.u32 %v2421, 4294901760
    %v2423 = vsub.f32 %v2421, %v2422
    %v2424 = vand.u32 %v2423, 4294901760
    %2425 = vmatpush.msra.mxu0 %v2424
    %v2426 = vand.u32 %v188, 4294901760
    %v2427 = vsub.f32 %v188, %v2426
    %v2428 = vand.u32 %v2427, 4294901760
    %v2429 = vsub.f32 %v2427, %v2428
    %v2430 = vand.u32 %v2429, 4294901760
    %2431 = vmatpush.msra.mxu0 %v2430
    %v2432 = vand.u32 %v184, 4294901760
    %v2433 = vsub.f32 %v184, %v2432
    %v2434 = vand.u32 %v2433, 4294901760
    %v2435 = vsub.f32 %v2433, %v2434
    %v2436 = vand.u32 %v2435, 4294901760
    %2437 = vmatpush.msra.mxu0 %v2436
    %v2438 = vand.u32 %v180, 4294901760
    %v2439 = vsub.f32 %v180, %v2438
    %v2440 = vand.u32 %v2439, 4294901760
    %v2441 = vsub.f32 %v2439, %v2440
    %v2442 = vand.u32 %v2441, 4294901760
    %2443 = vmatpush.msra.mxu0 %v2442
    %v2444 = vand.u32 %v176, 4294901760
    %v2445 = vsub.f32 %v176, %v2444
    %v2446 = vand.u32 %v2445, 4294901760
    %v2447 = vsub.f32 %v2445, %v2446
    %v2448 = vand.u32 %v2447, 4294901760
    %2449 = vmatpush.msra.mxu0 %v2448
    %v2450 = vand.u32 %v172, 4294901760
    %v2451 = vsub.f32 %v172, %v2450
    %v2452 = vand.u32 %v2451, 4294901760
    %v2453 = vsub.f32 %v2451, %v2452
    %v2454 = vand.u32 %v2453, 4294901760
    %2455 = vmatpush.msra.mxu0 %v2454
    %v2456 = vand.u32 %v168, 4294901760
    %v2457 = vsub.f32 %v168, %v2456
    %v2458 = vand.u32 %v2457, 4294901760
    %v2459 = vsub.f32 %v2457, %v2458
    %v2460 = vand.u32 %v2459, 4294901760
    %2461 = vmatpush.msra.mxu0 %v2460
    %v2462 = vand.u32 %v164, 4294901760
    %v2463 = vsub.f32 %v164, %v2462
    %v2464 = vand.u32 %v2463, 4294901760
    %v2465 = vsub.f32 %v2463, %v2464
    %v2466 = vand.u32 %v2465, 4294901760
    %2467 = vmatpush.msra.mxu0 %v2466
    %v2468 = vand.u32 %v160, 4294901760
    %v2469 = vsub.f32 %v160, %v2468
    %v2470 = vand.u32 %v2469, 4294901760
    %v2471 = vsub.f32 %v2469, %v2470
    %v2472 = vand.u32 %v2471, 4294901760
    %2473 = vmatpush.msra.mxu0 %v2472
    %v2474 = vand.u32 %v287, 4294901760
    %2475 = vmatmul.f32.gmra.mxu0 %v2474
    %v2476 = vpop.f32.mrf.mxu0
    %v2477 = vadd.f32 %v2376, %v2476
    %2478 = vdwg.mxu0
    %v2479 = vand.u32 %v220, 4294901760
    %v2480 = vsub.f32 %v220, %v2479
    %2481 = vmatpush.msra.mxu0 %v2480
    %v2482 = vand.u32 %v216, 4294901760
    %v2483 = vsub.f32 %v216, %v2482
    %2484 = vmatpush.msra.mxu0 %v2483
    %v2485 = vand.u32 %v212, 4294901760
    %v2486 = vsub.f32 %v212, %v2485
    %2487 = vmatpush.msra.mxu0 %v2486
    %v2488 = vand.u32 %v208, 4294901760
    %v2489 = vsub.f32 %v208, %v2488
    %2490 = vmatpush.msra.mxu0 %v2489
    %v2491 = vand.u32 %v204, 4294901760
    %v2492 = vsub.f32 %v204, %v2491
    %2493 = vmatpush.msra.mxu0 %v2492
    %v2494 = vand.u32 %v200, 4294901760
    %v2495 = vsub.f32 %v200, %v2494
    %2496 = vmatpush.msra.mxu0 %v2495
    %v2497 = vand.u32 %v196, 4294901760
    %v2498 = vsub.f32 %v196, %v2497
    %2499 = vmatpush.msra.mxu0 %v2498
    %v2500 = vand.u32 %v192, 4294901760
    %v2501 = vsub.f32 %v192, %v2500
    %2502 = vmatpush.msra.mxu0 %v2501
    %v2503 = vand.u32 %v188, 4294901760
    %v2504 = vsub.f32 %v188, %v2503
    %2505 = vmatpush.msra.mxu0 %v2504
    %v2506 = vand.u32 %v184, 4294901760
    %v2507 = vsub.f32 %v184, %v2506
    %2508 = vmatpush.msra.mxu0 %v2507
    %v2509 = vand.u32 %v180, 4294901760
    %v2510 = vsub.f32 %v180, %v2509
    %2511 = vmatpush.msra.mxu0 %v2510
    %v2512 = vand.u32 %v176, 4294901760
    %v2513 = vsub.f32 %v176, %v2512
    %2514 = vmatpush.msra.mxu0 %v2513
    %v2515 = vand.u32 %v172, 4294901760
    %v2516 = vsub.f32 %v172, %v2515
    %2517 = vmatpush.msra.mxu0 %v2516
    %v2518 = vand.u32 %v168, 4294901760
    %v2519 = vsub.f32 %v168, %v2518
    %2520 = vmatpush.msra.mxu0 %v2519
    %v2521 = vand.u32 %v164, 4294901760
    %v2522 = vsub.f32 %v164, %v2521
    %2523 = vmatpush.msra.mxu0 %v2522
    %v2524 = vand.u32 %v160, 4294901760
    %v2525 = vsub.f32 %v160, %v2524
    %2526 = vmatpush.msra.mxu0 %v2525
    %v2527 = vand.u32 %v287, 4294901760
    %v2528 = vsub.f32 %v287, %v2527
    %2529 = vmatmul.f32.gmra.mxu0 %v2528
    %v2530 = vpop.f32.mrf.mxu0
    %v2531 = vadd.f32 %v2477, %v2530
    %2532 = vdwg.mxu0
    %v2533 = vand.u32 %v220, 4294901760
    %2534 = vmatpush.msra.mxu0 %v2533
    %v2535 = vand.u32 %v216, 4294901760
    %2536 = vmatpush.msra.mxu0 %v2535
    %v2537 = vand.u32 %v212, 4294901760
    %2538 = vmatpush.msra.mxu0 %v2537
    %v2539 = vand.u32 %v208, 4294901760
    %2540 = vmatpush.msra.mxu0 %v2539
    %v2541 = vand.u32 %v204, 4294901760
    %2542 = vmatpush.msra.mxu0 %v2541
    %v2543 = vand.u32 %v200, 4294901760
    %2544 = vmatpush.msra.mxu0 %v2543
    %v2545 = vand.u32 %v196, 4294901760
    %2546 = vmatpush.msra.mxu0 %v2545
    %v2547 = vand.u32 %v192, 4294901760
    %2548 = vmatpush.msra.mxu0 %v2547
    %v2549 = vand.u32 %v188, 4294901760
    %2550 = vmatpush.msra.mxu0 %v2549
    %v2551 = vand.u32 %v184, 4294901760
    %2552 = vmatpush.msra.mxu0 %v2551
    %v2553 = vand.u32 %v180, 4294901760
    %2554 = vmatpush.msra.mxu0 %v2553
    %v2555 = vand.u32 %v176, 4294901760
    %2556 = vmatpush.msra.mxu0 %v2555
    %v2557 = vand.u32 %v172, 4294901760
    %2558 = vmatpush.msra.mxu0 %v2557
    %v2559 = vand.u32 %v168, 4294901760
    %2560 = vmatpush.msra.mxu0 %v2559
    %v2561 = vand.u32 %v164, 4294901760
    %2562 = vmatpush.msra.mxu0 %v2561
    %v2563 = vand.u32 %v160, 4294901760
    %2564 = vmatpush.msra.mxu0 %v2563
    %v2565 = vand.u32 %v287, 4294901760
    %v2566 = vsub.f32 %v287, %v2565
    %v2567 = vand.u32 %v2566, 4294901760
    %2568 = vmatmul.f32.gmra.mxu0 %v2567
    %v2569 = vpop.f32.mrf.mxu0
    %v2570 = vadd.f32 %v2531, %v2569
    %2571 = vdwg.mxu0
    %v2572 = vand.u32 %v220, 4294901760
    %v2573 = vsub.f32 %v220, %v2572
    %v2574 = vand.u32 %v2573, 4294901760
    %2575 = vmatpush.msra.mxu0 %v2574
    %v2576 = vand.u32 %v216, 4294901760
    %v2577 = vsub.f32 %v216, %v2576
    %v2578 = vand.u32 %v2577, 4294901760
    %2579 = vmatpush.msra.mxu0 %v2578
    %v2580 = vand.u32 %v212, 4294901760
    %v2581 = vsub.f32 %v212, %v2580
    %v2582 = vand.u32 %v2581, 4294901760
    %2583 = vmatpush.msra.mxu0 %v2582
    %v2584 = vand.u32 %v208, 4294901760
    %v2585 = vsub.f32 %v208, %v2584
    %v2586 = vand.u32 %v2585, 4294901760
    %2587 = vmatpush.msra.mxu0 %v2586
    %v2588 = vand.u32 %v204, 4294901760
    %v2589 = vsub.f32 %v204, %v2588
    %v2590 = vand.u32 %v2589, 4294901760
    %2591 = vmatpush.msra.mxu0 %v2590
    %v2592 = vand.u32 %v200, 4294901760
    %v2593 = vsub.f32 %v200, %v2592
    %v2594 = vand.u32 %v2593, 4294901760
    %2595 = vmatpush.msra.mxu0 %v2594
    %v2596 = vand.u32 %v196, 4294901760
    %v2597 = vsub.f32 %v196, %v2596
    %v2598 = vand.u32 %v2597, 4294901760
    %2599 = vmatpush.msra.mxu0 %v2598
    %v2600 = vand.u32 %v192, 4294901760
    %v2601 = vsub.f32 %v192, %v2600
    %v2602 = vand.u32 %v2601, 4294901760
    %2603 = vmatpush.msra.mxu0 %v2602
    %v2604 = vand.u32 %v188, 4294901760
    %v2605 = vsub.f32 %v188, %v2604
    %v2606 = vand.u32 %v2605, 4294901760
    %2607 = vmatpush.msra.mxu0 %v2606
    %v2608 = vand.u32 %v184, 4294901760
    %v2609 = vsub.f32 %v184, %v2608
    %v2610 = vand.u32 %v2609, 4294901760
    %2611 = vmatpush.msra.mxu0 %v2610
    %v2612 = vand.u32 %v180, 4294901760
    %v2613 = vsub.f32 %v180, %v2612
    %v2614 = vand.u32 %v2613, 4294901760
    %2615 = vmatpush.msra.mxu0 %v2614
    %v2616 = vand.u32 %v176, 4294901760
    %v2617 = vsub.f32 %v176, %v2616
    %v2618 = vand.u32 %v2617, 4294901760
    %2619 = vmatpush.msra.mxu0 %v2618
    %v2620 = vand.u32 %v172, 4294901760
    %v2621 = vsub.f32 %v172, %v2620
    %v2622 = vand.u32 %v2621, 4294901760
    %2623 = vmatpush.msra.mxu0 %v2622
    %v2624 = vand.u32 %v168, 4294901760
    %v2625 = vsub.f32 %v168, %v2624
    %v2626 = vand.u32 %v2625, 4294901760
    %2627 = vmatpush.msra.mxu0 %v2626
    %v2628 = vand.u32 %v164, 4294901760
    %v2629 = vsub.f32 %v164, %v2628
    %v2630 = vand.u32 %v2629, 4294901760
    %2631 = vmatpush.msra.mxu0 %v2630
    %v2632 = vand.u32 %v160, 4294901760
    %v2633 = vsub.f32 %v160, %v2632
    %v2634 = vand.u32 %v2633, 4294901760
    %2635 = vmatpush.msra.mxu0 %v2634
    %v2636 = vand.u32 %v287, 4294901760
    %2637 = vmatmul.f32.gmra.mxu0 %v2636
    %v2638 = vpop.f32.mrf.mxu0
    %v2639 = vadd.f32 %v2570, %v2638
    %2640 = vdwg.mxu0
    %v2641 = vand.u32 %v220, 4294901760
    %2642 = vmatpush.msra.mxu0 %v2641
    %v2643 = vand.u32 %v216, 4294901760
    %2644 = vmatpush.msra.mxu0 %v2643
    %v2645 = vand.u32 %v212, 4294901760
    %2646 = vmatpush.msra.mxu0 %v2645
    %v2647 = vand.u32 %v208, 4294901760
    %2648 = vmatpush.msra.mxu0 %v2647
    %v2649 = vand.u32 %v204, 4294901760
    %2650 = vmatpush.msra.mxu0 %v2649
    %v2651 = vand.u32 %v200, 4294901760
    %2652 = vmatpush.msra.mxu0 %v2651
    %v2653 = vand.u32 %v196, 4294901760
    %2654 = vmatpush.msra.mxu0 %v2653
    %v2655 = vand.u32 %v192, 4294901760
    %2656 = vmatpush.msra.mxu0 %v2655
    %v2657 = vand.u32 %v188, 4294901760
    %2658 = vmatpush.msra.mxu0 %v2657
    %v2659 = vand.u32 %v184, 4294901760
    %2660 = vmatpush.msra.mxu0 %v2659
    %v2661 = vand.u32 %v180, 4294901760
    %2662 = vmatpush.msra.mxu0 %v2661
    %v2663 = vand.u32 %v176, 4294901760
    %2664 = vmatpush.msra.mxu0 %v2663
    %v2665 = vand.u32 %v172, 4294901760
    %2666 = vmatpush.msra.mxu0 %v2665
    %v2667 = vand.u32 %v168, 4294901760
    %2668 = vmatpush.msra.mxu0 %v2667
    %v2669 = vand.u32 %v164, 4294901760
    %2670 = vmatpush.msra.mxu0 %v2669
    %v2671 = vand.u32 %v160, 4294901760
    %2672 = vmatpush.msra.mxu0 %v2671
    %v2673 = vand.u32 %v287, 4294901760
    %2674 = vmatmul.f32.gmra.mxu0 %v2673
    %v2675 = vpop.f32.mrf.mxu0
    %v2676 = vadd.f32 %v2639, %v2675
    %2677 = vdwg.mxu0
    %v2678 = vand.u32 %v284, 4294901760
    %2679 = vmatpush.msra.mxu0 %v2678
    %v2680 = vand.u32 %v280, 4294901760
    %2681 = vmatpush.msra.mxu0 %v2680
    %v2682 = vand.u32 %v276, 4294901760
    %2683 = vmatpush.msra.mxu0 %v2682
    %v2684 = vand.u32 %v272, 4294901760
    %2685 = vmatpush.msra.mxu0 %v2684
    %v2686 = vand.u32 %v268, 4294901760
    %2687 = vmatpush.msra.mxu0 %v2686
    %v2688 = vand.u32 %v264, 4294901760
    %2689 = vmatpush.msra.mxu0 %v2688
    %v2690 = vand.u32 %v260, 4294901760
    %2691 = vmatpush.msra.mxu0 %v2690
    %v2692 = vand.u32 %v256, 4294901760
    %2693 = vmatpush.msra.mxu0 %v2692
    %v2694 = vand.u32 %v252, 4294901760
    %2695 = vmatpush.msra.mxu0 %v2694
    %v2696 = vand.u32 %v248, 4294901760
    %2697 = vmatpush.msra.mxu0 %v2696
    %v2698 = vand.u32 %v244, 4294901760
    %2699 = vmatpush.msra.mxu0 %v2698
    %v2700 = vand.u32 %v240, 4294901760
    %2701 = vmatpush.msra.mxu0 %v2700
    %v2702 = vand.u32 %v236, 4294901760
    %2703 = vmatpush.msra.mxu0 %v2702
    %v2704 = vand.u32 %v232, 4294901760
    %2705 = vmatpush.msra.mxu0 %v2704
    %v2706 = vand.u32 %v228, 4294901760
    %2707 = vmatpush.msra.mxu0 %v2706
    %v2708 = vand.u32 %v224, 4294901760
    %2709 = vmatpush.msra.mxu0 %v2708
    %v2710 = vand.u32 %v288, 4294901760
    %v2711 = vsub.f32 %v288, %v2710
    %v2712 = vand.u32 %v2711, 4294901760
    %v2713 = vsub.f32 %v2711, %v2712
    %v2714 = vand.u32 %v2713, 4294901760
    %2715 = vmatmul.f32.gmra.mxu0 %v2714
    %v2716 = vpop.f32.mrf.mxu0
    %v2717 = vadd.f32 %v2676, %v2716
    %2718 = vdwg.mxu0
    %v2719 = vand.u32 %v284, 4294901760
    %v2720 = vsub.f32 %v284, %v2719
    %v2721 = vand.u32 %v2720, 4294901760
    %v2722 = vsub.f32 %v2720, %v2721
    %v2723 = vand.u32 %v2722, 4294901760
    %2724 = vmatpush.msra.mxu0 %v2723
    %v2725 = vand.u32 %v280, 4294901760
    %v2726 = vsub.f32 %v280, %v2725
    %v2727 = vand.u32 %v2726, 4294901760
    %v2728 = vsub.f32 %v2726, %v2727
    %v2729 = vand.u32 %v2728, 4294901760
    %2730 = vmatpush.msra.mxu0 %v2729
    %v2731 = vand.u32 %v276, 4294901760
    %v2732 = vsub.f32 %v276, %v2731
    %v2733 = vand.u32 %v2732, 4294901760
    %v2734 = vsub.f32 %v2732, %v2733
    %v2735 = vand.u32 %v2734, 4294901760
    %2736 = vmatpush.msra.mxu0 %v2735
    %v2737 = vand.u32 %v272, 4294901760
    %v2738 = vsub.f32 %v272, %v2737
    %v2739 = vand.u32 %v2738, 4294901760
    %v2740 = vsub.f32 %v2738, %v2739
    %v2741 = vand.u32 %v2740, 4294901760
    %2742 = vmatpush.msra.mxu0 %v2741
    %v2743 = vand.u32 %v268, 4294901760
    %v2744 = vsub.f32 %v268, %v2743
    %v2745 = vand.u32 %v2744, 4294901760
    %v2746 = vsub.f32 %v2744, %v2745
    %v2747 = vand.u32 %v2746, 4294901760
    %2748 = vmatpush.msra.mxu0 %v2747
    %v2749 = vand.u32 %v264, 4294901760
    %v2750 = vsub.f32 %v264, %v2749
    %v2751 = vand.u32 %v2750, 4294901760
    %v2752 = vsub.f32 %v2750, %v2751
    %v2753 = vand.u32 %v2752, 4294901760
    %2754 = vmatpush.msra.mxu0 %v2753
    %v2755 = vand.u32 %v260, 4294901760
    %v2756 = vsub.f32 %v260, %v2755
    %v2757 = vand.u32 %v2756, 4294901760
    %v2758 = vsub.f32 %v2756, %v2757
    %v2759 = vand.u32 %v2758, 4294901760
    %2760 = vmatpush.msra.mxu0 %v2759
    %v2761 = vand.u32 %v256, 4294901760
    %v2762 = vsub.f32 %v256, %v2761
    %v2763 = vand.u32 %v2762, 4294901760
    %v2764 = vsub.f32 %v2762, %v2763
    %v2765 = vand.u32 %v2764, 4294901760
    %2766 = vmatpush.msra.mxu0 %v2765
    %v2767 = vand.u32 %v252, 4294901760
    %v2768 = vsub.f32 %v252, %v2767
    %v2769 = vand.u32 %v2768, 4294901760
    %v2770 = vsub.f32 %v2768, %v2769
    %v2771 = vand.u32 %v2770, 4294901760
    %2772 = vmatpush.msra.mxu0 %v2771
    %v2773 = vand.u32 %v248, 4294901760
    %v2774 = vsub.f32 %v248, %v2773
    %v2775 = vand.u32 %v2774, 4294901760
    %v2776 = vsub.f32 %v2774, %v2775
    %v2777 = vand.u32 %v2776, 4294901760
    %2778 = vmatpush.msra.mxu0 %v2777
    %v2779 = vand.u32 %v244, 4294901760
    %v2780 = vsub.f32 %v244, %v2779
    %v2781 = vand.u32 %v2780, 4294901760
    %v2782 = vsub.f32 %v2780, %v2781
    %v2783 = vand.u32 %v2782, 4294901760
    %2784 = vmatpush.msra.mxu0 %v2783
    %v2785 = vand.u32 %v240, 4294901760
    %v2786 = vsub.f32 %v240, %v2785
    %v2787 = vand.u32 %v2786, 4294901760
    %v2788 = vsub.f32 %v2786, %v2787
    %v2789 = vand.u32 %v2788, 4294901760
    %2790 = vmatpush.msra.mxu0 %v2789
    %v2791 = vand.u32 %v236, 4294901760
    %v2792 = vsub.f32 %v236, %v2791
    %v2793 = vand.u32 %v2792, 4294901760
    %v2794 = vsub.f32 %v2792, %v2793
    %v2795 = vand.u32 %v2794, 4294901760
    %2796 = vmatpush.msra.mxu0 %v2795
    %v2797 = vand.u32 %v232, 4294901760
    %v2798 = vsub.f32 %v232, %v2797
    %v2799 = vand.u32 %v2798, 4294901760
    %v2800 = vsub.f32 %v2798, %v2799
    %v2801 = vand.u32 %v2800, 4294901760
    %2802 = vmatpush.msra.mxu0 %v2801
    %v2803 = vand.u32 %v228, 4294901760
    %v2804 = vsub.f32 %v228, %v2803
    %v2805 = vand.u32 %v2804, 4294901760
    %v2806 = vsub.f32 %v2804, %v2805
    %v2807 = vand.u32 %v2806, 4294901760
    %2808 = vmatpush.msra.mxu0 %v2807
    %v2809 = vand.u32 %v224, 4294901760
    %v2810 = vsub.f32 %v224, %v2809
    %v2811 = vand.u32 %v2810, 4294901760
    %v2812 = vsub.f32 %v2810, %v2811
    %v2813 = vand.u32 %v2812, 4294901760
    %2814 = vmatpush.msra.mxu0 %v2813
    %v2815 = vand.u32 %v288, 4294901760
    %2816 = vmatmul.f32.gmra.mxu0 %v2815
    %v2817 = vpop.f32.mrf.mxu0
    %v2818 = vadd.f32 %v2717, %v2817
    %2819 = vdwg.mxu0
    %v2820 = vand.u32 %v284, 4294901760
    %v2821 = vsub.f32 %v284, %v2820
    %2822 = vmatpush.msra.mxu0 %v2821
    %v2823 = vand.u32 %v280, 4294901760
    %v2824 = vsub.f32 %v280, %v2823
    %2825 = vmatpush.msra.mxu0 %v2824
    %v2826 = vand.u32 %v276, 4294901760
    %v2827 = vsub.f32 %v276, %v2826
    %2828 = vmatpush.msra.mxu0 %v2827
    %v2829 = vand.u32 %v272, 4294901760
    %v2830 = vsub.f32 %v272, %v2829
    %2831 = vmatpush.msra.mxu0 %v2830
    %v2832 = vand.u32 %v268, 4294901760
    %v2833 = vsub.f32 %v268, %v2832
    %2834 = vmatpush.msra.mxu0 %v2833
    %v2835 = vand.u32 %v264, 4294901760
    %v2836 = vsub.f32 %v264, %v2835
    %2837 = vmatpush.msra.mxu0 %v2836
    %v2838 = vand.u32 %v260, 4294901760
    %v2839 = vsub.f32 %v260, %v2838
    %2840 = vmatpush.msra.mxu0 %v2839
    %v2841 = vand.u32 %v256, 4294901760
    %v2842 = vsub.f32 %v256, %v2841
    %2843 = vmatpush.msra.mxu0 %v2842
    %v2844 = vand.u32 %v252, 4294901760
    %v2845 = vsub.f32 %v252, %v2844
    %2846 = vmatpush.msra.mxu0 %v2845
    %v2847 = vand.u32 %v248, 4294901760
    %v2848 = vsub.f32 %v248, %v2847
    %2849 = vmatpush.msra.mxu0 %v2848
    %v2850 = vand.u32 %v244, 4294901760
    %v2851 = vsub.f32 %v244, %v2850
    %2852 = vmatpush.msra.mxu0 %v2851
    %v2853 = vand.u32 %v240, 4294901760
    %v2854 = vsub.f32 %v240, %v2853
    %2855 = vmatpush.msra.mxu0 %v2854
    %v2856 = vand.u32 %v236, 4294901760
    %v2857 = vsub.f32 %v236, %v2856
    %2858 = vmatpush.msra.mxu0 %v2857
    %v2859 = vand.u32 %v232, 4294901760
    %v2860 = vsub.f32 %v232, %v2859
    %2861 = vmatpush.msra.mxu0 %v2860
    %v2862 = vand.u32 %v228, 4294901760
    %v2863 = vsub.f32 %v228, %v2862
    %2864 = vmatpush.msra.mxu0 %v2863
    %v2865 = vand.u32 %v224, 4294901760
    %v2866 = vsub.f32 %v224, %v2865
    %2867 = vmatpush.msra.mxu0 %v2866
    %v2868 = vand.u32 %v288, 4294901760
    %v2869 = vsub.f32 %v288, %v2868
    %2870 = vmatmul.f32.gmra.mxu0 %v2869
    %v2871 = vpop.f32.mrf.mxu0
    %v2872 = vadd.f32 %v2818, %v2871
    %2873 = vdwg.mxu0
    %v2874 = vand.u32 %v284, 4294901760
    %2875 = vmatpush.msra.mxu0 %v2874
    %v2876 = vand.u32 %v280, 4294901760
    %2877 = vmatpush.msra.mxu0 %v2876
    %v2878 = vand.u32 %v276, 4294901760
    %2879 = vmatpush.msra.mxu0 %v2878
    %v2880 = vand.u32 %v272, 4294901760
    %2881 = vmatpush.msra.mxu0 %v2880
    %v2882 = vand.u32 %v268, 4294901760
    %2883 = vmatpush.msra.mxu0 %v2882
    %v2884 = vand.u32 %v264, 4294901760
    %2885 = vmatpush.msra.mxu0 %v2884
    %v2886 = vand.u32 %v260, 4294901760
    %2887 = vmatpush.msra.mxu0 %v2886
    %v2888 = vand.u32 %v256, 4294901760
    %2889 = vmatpush.msra.mxu0 %v2888
    %v2890 = vand.u32 %v252, 4294901760
    %2891 = vmatpush.msra.mxu0 %v2890
    %v2892 = vand.u32 %v248, 4294901760
    %2893 = vmatpush.msra.mxu0 %v2892
    %v2894 = vand.u32 %v244, 4294901760
    %2895 = vmatpush.msra.mxu0 %v2894
    %v2896 = vand.u32 %v240, 4294901760
    %2897 = vmatpush.msra.mxu0 %v2896
    %v2898 = vand.u32 %v236, 4294901760
    %2899 = vmatpush.msra.mxu0 %v2898
    %v2900 = vand.u32 %v232, 4294901760
    %2901 = vmatpush.msra.mxu0 %v2900
    %v2902 = vand.u32 %v228, 4294901760
    %2903 = vmatpush.msra.mxu0 %v2902
    %v2904 = vand.u32 %v224, 4294901760
    %2905 = vmatpush.msra.mxu0 %v2904
    %v2906 = vand.u32 %v288, 4294901760
    %v2907 = vsub.f32 %v288, %v2906
    %v2908 = vand.u32 %v2907, 4294901760
    %2909 = vmatmul.f32.gmra.mxu0 %v2908
    %v2910 = vpop.f32.mrf.mxu0
    %v2911 = vadd.f32 %v2872, %v2910
    %2912 = vdwg.mxu0
    %v2913 = vand.u32 %v284, 4294901760
    %v2914 = vsub.f32 %v284, %v2913
    %v2915 = vand.u32 %v2914, 4294901760
    %2916 = vmatpush.msra.mxu0 %v2915
    %v2917 = vand.u32 %v280, 4294901760
    %v2918 = vsub.f32 %v280, %v2917
    %v2919 = vand.u32 %v2918, 4294901760
    %2920 = vmatpush.msra.mxu0 %v2919
    %v2921 = vand.u32 %v276, 4294901760
    %v2922 = vsub.f32 %v276, %v2921
    %v2923 = vand.u32 %v2922, 4294901760
    %2924 = vmatpush.msra.mxu0 %v2923
    %v2925 = vand.u32 %v272, 4294901760
    %v2926 = vsub.f32 %v272, %v2925
    %v2927 = vand.u32 %v2926, 4294901760
    %2928 = vmatpush.msra.mxu0 %v2927
    %v2929 = vand.u32 %v268, 4294901760
    %v2930 = vsub.f32 %v268, %v2929
    %v2931 = vand.u32 %v2930, 4294901760
    %2932 = vmatpush.msra.mxu0 %v2931
    %v2933 = vand.u32 %v264, 4294901760
    %v2934 = vsub.f32 %v264, %v2933
    %v2935 = vand.u32 %v2934, 4294901760
    %2936 = vmatpush.msra.mxu0 %v2935
    %v2937 = vand.u32 %v260, 4294901760
    %v2938 = vsub.f32 %v260, %v2937
    %v2939 = vand.u32 %v2938, 4294901760
    %2940 = vmatpush.msra.mxu0 %v2939
    %v2941 = vand.u32 %v256, 4294901760
    %v2942 = vsub.f32 %v256, %v2941
    %v2943 = vand.u32 %v2942, 4294901760
    %2944 = vmatpush.msra.mxu0 %v2943
    %v2945 = vand.u32 %v252, 4294901760
    %v2946 = vsub.f32 %v252, %v2945
    %v2947 = vand.u32 %v2946, 4294901760
    %2948 = vmatpush.msra.mxu0 %v2947
    %v2949 = vand.u32 %v248, 4294901760
    %v2950 = vsub.f32 %v248, %v2949
    %v2951 = vand.u32 %v2950, 4294901760
    %2952 = vmatpush.msra.mxu0 %v2951
    %v2953 = vand.u32 %v244, 4294901760
    %v2954 = vsub.f32 %v244, %v2953
    %v2955 = vand.u32 %v2954, 4294901760
    %2956 = vmatpush.msra.mxu0 %v2955
    %v2957 = vand.u32 %v240, 4294901760
    %v2958 = vsub.f32 %v240, %v2957
    %v2959 = vand.u32 %v2958, 4294901760
    %2960 = vmatpush.msra.mxu0 %v2959
    %v2961 = vand.u32 %v236, 4294901760
    %v2962 = vsub.f32 %v236, %v2961
    %v2963 = vand.u32 %v2962, 4294901760
    %2964 = vmatpush.msra.mxu0 %v2963
    %v2965 = vand.u32 %v232, 4294901760
    %v2966 = vsub.f32 %v232, %v2965
    %v2967 = vand.u32 %v2966, 4294901760
    %2968 = vmatpush.msra.mxu0 %v2967
    %v2969 = vand.u32 %v228, 4294901760
    %v2970 = vsub.f32 %v228, %v2969
    %v2971 = vand.u32 %v2970, 4294901760
    %2972 = vmatpush.msra.mxu0 %v2971
    %v2973 = vand.u32 %v224, 4294901760
    %v2974 = vsub.f32 %v224, %v2973
    %v2975 = vand.u32 %v2974, 4294901760
    %2976 = vmatpush.msra.mxu0 %v2975
    %v2977 = vand.u32 %v288, 4294901760
    %2978 = vmatmul.f32.gmra.mxu0 %v2977
    %v2979 = vpop.f32.mrf.mxu0
    %v2980 = vadd.f32 %v2911, %v2979
    %2981 = vdwg.mxu0
    %v2982 = vand.u32 %v284, 4294901760
    %2983 = vmatpush.msra.mxu0 %v2982
    %v2984 = vand.u32 %v280, 4294901760
    %2985 = vmatpush.msra.mxu0 %v2984
    %v2986 = vand.u32 %v276, 4294901760
    %2987 = vmatpush.msra.mxu0 %v2986
    %v2988 = vand.u32 %v272, 4294901760
    %2989 = vmatpush.msra.mxu0 %v2988
    %v2990 = vand.u32 %v268, 4294901760
    %2991 = vmatpush.msra.mxu0 %v2990
    %v2992 = vand.u32 %v264, 4294901760
    %2993 = vmatpush.msra.mxu0 %v2992
    %v2994 = vand.u32 %v260, 4294901760
    %2995 = vmatpush.msra.mxu0 %v2994
    %v2996 = vand.u32 %v256, 4294901760
    %2997 = vmatpush.msra.mxu0 %v2996
    %v2998 = vand.u32 %v252, 4294901760
    %2999 = vmatpush.msra.mxu0 %v2998
    %v3000 = vand.u32 %v248, 4294901760
    %3001 = vmatpush.msra.mxu0 %v3000
    %v3002 = vand.u32 %v244, 4294901760
    %3003 = vmatpush.msra.mxu0 %v3002
    %v3004 = vand.u32 %v240, 4294901760
    %3005 = vmatpush.msra.mxu0 %v3004
    %v3006 = vand.u32 %v236, 4294901760
    %3007 = vmatpush.msra.mxu0 %v3006
    %v3008 = vand.u32 %v232, 4294901760
    %3009 = vmatpush.msra.mxu0 %v3008
    %v3010 = vand.u32 %v228, 4294901760
    %3011 = vmatpush.msra.mxu0 %v3010
    %v3012 = vand.u32 %v224, 4294901760
    %3013 = vmatpush.msra.mxu0 %v3012
    %v3014 = vand.u32 %v288, 4294901760
    %3015 = vmatmul.f32.gmra.mxu0 %v3014
    %v3016 = vpop.f32.mrf.mxu0
    %v3017 = vadd.f32 %v2980, %v3016
    %3018 = vdwg.mxu0
    %v3019 = vmul.f32 %v971, %v971
    %v3020 = vmul.f32 %v1653, %v1653
    %v3021 = vmul.f32 %v2335, %v2335
    %v3022 = vmul.f32 %v3017, %v3017
    %v3023 = vadd.f32 %v3019, %v3021
    %v3024 = vadd.f32 %v3020, %v3022
    %v3025 = vsel %vm132, %v3023, 0.0
    %v3026 = vrot.slane %v3025, 4
    %v3027 = vadd.f32 %v3025, %v3026
    %v3028 = vrot.slane %v3027, 2
    %v3029 = vadd.f32 %v3027, %v3028
    %v3030 = vrot.slane %v3029, 1
    %v3031 = vadd.f32 %v3029, %v3030
    %v3032 = vsel %vm132, %v3024, 0.0
    %v3033 = vrot.slane %v3032, 4
    %v3034 = vadd.f32 %v3032, %v3033
    %v3035 = vrot.slane %v3034, 2
    %v3036 = vadd.f32 %v3034, %v3035
    %v3037 = vrot.slane %v3036, 1
    %v3038 = vadd.f32 %v3036, %v3037
    %v3039 = vmul.f32 %v3031, %v151
    %v3040 = vmul.f32 %v3038, %v151
    %v3041 = vlog2.pop %v3039
    %v3042 = vmul.f32 %v3041, 0.6931472
    %v3043 = vlog2.pop %v3040
    %v3044 = vmul.f32 %v3043, 0.6931472
    %v3045 = vadd.f32 %v3042, %v3044
    %3046 = vadd.xlane.f32.xlu0 %v3045
    %v3047 = vpop.xlane.xlu0 %3046
    %v3048 = vrcp.pop 256.0
    %v3049 = vmul.f32 256.0, %v3048
    %v3050 = vsub.f32 1.0, %v3049
    %v3051 = vmul.f32 %v3048, %v3050
    %v3052 = vadd.f32 %v3048, %v3051
    %vm3053 = vweird.f32 %v3048
    %v3054 = vsel %vm3053, %v3048, %v3052
    %v3055 = vmul.f32 %v3047, %v3054
    %v3056 = vlog2.pop %v152
    %v3057 = vmul.f32 %v3056, 0.6931472
    %v3058 = vsub.f32 %v3055, %v3057
    %s3059 = sld [smem:[#allocation4]]
    %v3060 = vstv %s3059
    %v3061 = vmul.f32 %v3060, %v3058
    %v3062 = vsub.f32 %v123, %v3061
    %vm3063 = vcmask 0
    %3064 = vst.msk [vmem:[#allocation5] sm:$0x1] %vm3063, %v3062
    // Predicated region
    $region18: #{fn.1} parent=1 // pred_check
      _
    $region19: #{fn.1} parent=1 // pred_check_branch
      %3066 = sbr.rel (0) target = $region21
    $region20: #{fn.1} parent=1 // pred_region
      %3068 = vsyncadd [#allocation6], 0
      %s3070 = sshll.u32 [#allocation5], 4
      %s3071 = int_to_ptr.vmem [resolvable:$true] %s3070
      %s3072 = sshll.u32 %s4, 4
      %s3073 = int_to_ptr.hbm [resolvable:$true] %s3072
      %3075 = dma.vmem_to_hbm [thread:$0]  %s3071, 16, %s3073, [#allocation6]
    $region21: #{fn.1} parent=1 // pred_fallthru
      _
    // Predicated region
    $region22: #{fn.1} parent=1 // pred_check
      _
    $region23: #{fn.1} parent=1 // pred_check_branch
      %3077 = sbr.rel (0) target = $region25
    $region24: #{fn.1} parent=1 // pred_region
      %3079 = dma.done [#allocation6], 16
    $region25: #{fn.1} parent=1 // pred_fallthru
      _
    %3080 = vsyncpa [#allocation6], 1
  %3081 = vsyncmov [#allocation3]
  %s3082 = vpop.sfrf %3081
  %p3083 = scmp.eq.s32.totalorder %s3082, 0
  %p3084 = pneg %p3083
  %3086 = shalt.err (%p3084)

</llo_original>
